<compile_context>
chip_gen: v7x
topology: tpu7x:2x2x1
jax: 0.10.0
libtpu: 0.0.40
codegen_flags: <defaults>
</compile_context>

<pallas_src>
import jax
import jax.numpy as jnp
import numpy as np
from jax.experimental import pallas as pl
from jax.experimental.pallas import tpu as pltpu


# --------------------------------------------------------------------------------------
# Kernel
# --------------------------------------------------------------------------------------
def feature_nn_kernel(x_ref, w1t_ref, c1_ref, w2t_ref, c2_ref,
                      w3t_ref, c3_ref, w4_ref, o_ref):
    xv = x_ref[...]                                               # (1, TILE_B) f32, batch on lanes

    # LinReLU(1, num_units): K=1 -> pure VPU broadcast FMA, stays off the MXU.
    h = jnp.maximum(w1t_ref[...] * xv - c1_ref[...], 0.0)        # (U, TILE_B) f32

    # LinReLU(num_units, H0): MXU matmul, bf16 (or f32) operands, f32 accumulation.
    # Bias folded post-matmul: c2 = b2 @ W2.
    h = jnp.dot(w2t_ref[...], h.astype(w2t_ref.dtype),
                preferred_element_type=jnp.float32)
    h = jnp.maximum(h - c2_ref[...], 0.0)                        # (H0, TILE_B) f32

    # LinReLU(H0, H1)
    h = jnp.dot(w3t_ref[...], h.astype(w3t_ref.dtype),
                preferred_element_type=jnp.float32)
    h = jnp.maximum(h - c3_ref[...], 0.0)                        # (H1, TILE_B) f32

    # Linear(H1, 1, bias=False): N=1 -> VPU multiply + XLU sublane reduce, lane-dense result.
    out = jnp.sum(h * w4_ref[...], axis=0, keepdims=True)        # (1, TILE_B)
    o_ref[...] = out.astype(o_ref.dtype)


# --------------------------------------------------------------------------------------
# Tile selection (review items 4/5: size the grid to the TensorCore count)
# --------------------------------------------------------------------------------------
_MAX_TILE_B = 4096  # lane-tile cap; VMEM footprint at 4096 lanes is still ~1 MB


def _choose_tile_b(B, num_features, max_tile=_MAX_TILE_B):
    two_tc = False
    try:
        two_tc = "v7" in jax.devices()[0].device_kind.lower()
    except Exception:  # pragma: no cover - device query is best-effort
        pass
    if num_features == 1 and two_tc and B > 128:
        # >= 2 balanced lane tiles so both v7x TensorCores get work.
        half = ((B + 1) // 2 + 127) // 128 * 128
        if half < B:
            return min(half, max_tile)
    if B <= max_tile:
        return B          # one full-extent block per feature (always layout-legal)
    return max_tile       # multiple of 128; Pallas masks the partial tail block


def _legalize_tile_b(B, tile_b):
    t = max(128, (int(tile_b) // 128) * 128)
    return B if t >= B else t


# --------------------------------------------------------------------------------------
# Feature-batched wrapper: x (F, B), params stacked with a leading feature axis.
# --------------------------------------------------------------------------------------
def feature_nn_batched(x_fb, params, *, tile_b=None, use_bf16_matmul=True):
    """Runs F independent FeatureNNs in a single pallas_call.

    x_fb:   (F, B) float input (feature f's scalar inputs along the batch).
    params: (w1, b1, w2, b2, w3, b3, w4), each with a leading F axis, in the PyTorch
            (in_features, out_features) weight / (in_features,) bias layout.
    Returns (F, B) float32.
    """
    w1, b1, w2, b2, w3, b3, w4 = params
    F, B = int(x_fb.shape[0]), int(x_fb.shape[1])

    mm_dtype = jnp.bfloat16 if use_bf16_matmul else jnp.float32

    # ---- parameter-only preprocessing (done once, outside the kernel) ----
    # transpose so the batch rides the lane axis, and fold the pre-matmul bias into a
    # post-matmul constant:  (h - b) @ W == h @ W - (b @ W)
    w1t = jnp.swapaxes(w1, 1, 2).astype(jnp.float32)                            # (F, U, 1)
    c1 = jnp.einsum('fi,fiu->fu', b1, w1)[..., None].astype(jnp.float32)        # (F, U, 1)
    w2t = jnp.swapaxes(w2, 1, 2).astype(mm_dtype)                               # (F, H0, U)
    c2 = jnp.einsum('fi,fio->fo', b2, w2)[..., None].astype(jnp.float32)        # (F, H0, 1)
    w3t = jnp.swapaxes(w3, 1, 2).astype(mm_dtype)                               # (F, H1, H0)
    c3 = jnp.einsum('fi,fio->fo', b3, w3)[..., None].astype(jnp.float32)        # (F, H1, 1)
    w4c = w4.astype(jnp.float32)                                                # (F, H1, 1)

    tb = _choose_tile_b(B, F) if tile_b is None else _legalize_tile_b(B, tile_b)
    num_tiles = pl.cdiv(B, tb)

    # (F, B) -> (F, 1, B): metadata-only reshape, no extra HBM pass. Batch stays on lanes.
    x3 = x_fb.astype(jnp.float32).reshape(F, 1, B)

    row_spec = pl.BlockSpec((None, 1, tb), lambda f, i: (f, 0, i))

    def wspec(a):
        # Per-feature weight/bias block: varies only with the feature grid index, so it is
        # fetched once per feature and reused across all batch tiles of that feature.
        return pl.BlockSpec((None,) + a.shape[1:], lambda f, i: (f, 0, 0))

    out3 = pl.pallas_call(
        feature_nn_kernel,
        out_shape=jax.ShapeDtypeStruct((F, 1, B), jnp.float32),
        grid=(F, num_tiles),
        in_specs=[row_spec,
                  wspec(w1t), wspec(c1),
                  wspec(w2t), wspec(c2),
                  wspec(w3t), wspec(c3),
                  wspec(w4c)],
        out_specs=row_spec,
        compiler_params=pltpu.CompilerParams(
            dimension_semantics=("parallel", "parallel")),
    )(x3, w1t, c1, w2t, c2, w3t, c3, w4c)

    return out3.reshape(F, B)


# --------------------------------------------------------------------------------------
# Original single-FeatureNN module semantics: x (B,) -> (B, 1)
# --------------------------------------------------------------------------------------
def feature_nn(x, params, *, tile_b=None, use_bf16_matmul=True):
    """params = (w1, b1, w2, b2, w3, b3, w4) in PyTorch layout (no feature axis)."""
    stacked = tuple(p[None] for p in params)
    out = feature_nn_batched(x.reshape(1, -1), stacked,
                             tile_b=tile_b, use_bf16_matmul=use_bf16_matmul)  # (1, B)
    return out.reshape(-1, 1)   # metadata-only (leading dim is 1)


# --------------------------------------------------------------------------------------
# Pure-JAX references (original un-folded, un-transposed math)
# --------------------------------------------------------------------------------------
def feature_nn_ref(x, params):
    w1, b1, w2, b2, w3, b3, w4 = params
    h = x.reshape(-1, 1)                                          # unsqueeze(1)
    h = jnp.maximum((h - b1) @ w1, 0.0)
    h = jnp.maximum((h - b2) @ w2, 0.0)
    h = jnp.maximum((h - b3) @ w3, 0.0)
    return h @ w4                                                 # (B, 1)


def feature_nn_batched_ref(x_fb, stacked):
    def one(x, w1, b1, w2, b2, w3, b3, w4):
        return feature_nn_ref(x, (w1, b1, w2, b2, w3, b3, w4))[:, 0]
    return jax.vmap(one)(x_fb, *stacked)                          # (F, B)


# --------------------------------------------------------------------------------------
# Deterministic synthetic parameters matching the PyTorch module shapes
# --------------------------------------------------------------------------------------
def init_stacked_params(key, num_features, num_units, hidden_sizes):
    h0, h1 = hidden_sizes
    k = jax.random.split(key, 7)
    in0 = 1  # FeatureNN: per-feature scalar input

    def xavier(kk, shape, fan_in, fan_out):
        lim = (6.0 / (fan_in + fan_out)) ** 0.5
        return jax.random.uniform(kk, shape, jnp.float32, -lim, lim)

    F = num_features
    # LinReLU: xavier_uniform weights; biases ~ trunc_normal(std=0.5) (synthetic normal*0.5)
    w1 = xavier(k[0], (F, in0, num_units), in0, num_units)
    b1 = 0.5 * jax.random.normal(k[1], (F, in0), jnp.float32)
    w2 = xavier(k[2], (F, num_units, h0), num_units, h0)
    b2 = 0.5 * jax.random.normal(k[3], (F, num_units), jnp.float32)
    w3 = xavier(k[4], (F, h0, h1), h0, h1)
    b3 = 0.5 * jax.random.normal(k[5], (F, h0), jnp.float32)
    # final nn.Linear(h1, 1, bias=False)
    lim4 = 1.0 / (h1 ** 0.5)
    w4 = jax.random.uniform(k[6], (F, h1, 1), jnp.float32, -lim4, lim4)
    return (w1, b1, w2, b2, w3, b3, w4)


if __name__ == "__main__":
    key = jax.random.PRNGKey(0)
    kx, kp = jax.random.split(key)

    NUM_FEATURES = 8              # NAM-style: 8 FeatureNNs in one pallas_call
    B = 1200                      # not a multiple of 128 -> exercises the masked tail block
    NUM_UNITS = 64
    HIDDEN = (64, 32)

    x_fb = jax.random.normal(kx, (NUM_FEATURES, B), jnp.float32)
    stacked = init_stacked_params(kp, NUM_FEATURES, NUM_UNITS, HIDDEN)
    ref_fb = feature_nn_batched_ref(x_fb, stacked)

    # (1) Exact-precision path (f32 matmul operands) vs. exact f32 reference, tight tol.
    out_f32 = jax.block_until_ready(
        feature_nn_batched(x_fb, stacked, use_bf16_matmul=False))
    np.testing.assert_allclose(np.asarray(out_f32), np.asarray(ref_fb),
                               rtol=1e-4, atol=1e-4)

    # (2) bf16-matmul fast path (f32 accumulation) vs. the same exact f32 reference.
    #     Tolerance loosened (bias folding + bf16 operand rounding), per the review.
    out_bf16 = jax.block_until_ready(
        feature_nn_batched(x_fb, stacked, use_bf16_matmul=True))
    np.testing.assert_allclose(np.asarray(out_bf16), np.asarray(ref_fb),
                               rtol=5e-2, atol=5e-2)

    # (3) Original single-FeatureNN module semantics: x (B,) -> (B, 1).
    per_feature_params = tuple(p[0] for p in stacked)
    out_single = jax.block_until_ready(
        feature_nn(x_fb[0], per_feature_params, use_bf16_matmul=False))
    ref_single = feature_nn_ref(x_fb[0], per_feature_params)
    np.testing.assert_allclose(np.asarray(out_single), np.asarray(ref_single),
                               rtol=1e-4, atol=1e-4)
    assert out_single.shape == (B, 1)

    print("KERNEL_OK")
</pallas_src>

<mosaic_0001>
module attributes {stable_mosaic.version = 11 : i64} {
  func.func @feature_nn_kernel(%arg0: i32, %arg1: i32, %arg2: memref<1x1x1200xf32, #tpu.memory_space<vmem>>, %arg3: memref<1x64x1xf32, #tpu.memory_space<vmem>>, %arg4: memref<1x64x1xf32, #tpu.memory_space<vmem>>, %arg5: memref<1x64x64xf32, #tpu.memory_space<vmem>>, %arg6: memref<1x64x1xf32, #tpu.memory_space<vmem>>, %arg7: memref<1x32x64xf32, #tpu.memory_space<vmem>>, %arg8: memref<1x32x1xf32, #tpu.memory_space<vmem>>, %arg9: memref<1x32x1xf32, #tpu.memory_space<vmem>>, %arg10: memref<1x1x1200xf32, #tpu.memory_space<vmem>>) attributes {dimension_semantics = [#tpu.dimension_semantics<parallel>, #tpu.dimension_semantics<parallel>], iteration_bounds = array<i64: 8, 1>, scalar_prefetch = 0 : i64, scratch_operands = 0 : i64, tpu.core_type = #tpu.core_type<tc>, window_params = [{transform_indices = @transform_0, window_bounds = array<i64: 1, 1, 1200>}, {transform_indices = @transform_1, window_bounds = array<i64: 1, 64, 1>}, {transform_indices = @transform_2, window_bounds = array<i64: 1, 64, 1>}, {transform_indices = @transform_3, window_bounds = array<i64: 1, 64, 64>}, {transform_indices = @transform_4, window_bounds = array<i64: 1, 64, 1>}, {transform_indices = @transform_5, window_bounds = array<i64: 1, 32, 64>}, {transform_indices = @transform_6, window_bounds = array<i64: 1, 32, 1>}, {transform_indices = @transform_7, window_bounds = array<i64: 1, 32, 1>}, {transform_indices = @transform_8, window_bounds = array<i64: 1, 1, 1200>}]} {
    %c0 = arith.constant 0 : index
    %c0_0 = arith.constant 0 : index
    %c0_1 = arith.constant 0 : index
    %0 = vector.load %arg2[%c0, %c0_0, %c0_1] : memref<1x1x1200xf32, #tpu.memory_space<vmem>>, vector<1x1x1200xf32>
    %1 = vector.shape_cast %0 : vector<1x1x1200xf32> to vector<1x1200xf32>
    %c0_2 = arith.constant 0 : index
    %c0_3 = arith.constant 0 : index
    %c0_4 = arith.constant 0 : index
    %2 = vector.load %arg3[%c0_2, %c0_3, %c0_4] : memref<1x64x1xf32, #tpu.memory_space<vmem>>, vector<1x64x1xf32>
    %3 = vector.shape_cast %2 : vector<1x64x1xf32> to vector<64x1xf32>
    %4 = vector.broadcast %3 : vector<64x1xf32> to vector<64x1200xf32>
    %5 = vector.broadcast %1 : vector<1x1200xf32> to vector<64x1200xf32>
    %6 = arith.mulf %4, %5 : vector<64x1200xf32>
    %c0_5 = arith.constant 0 : index
    %c0_6 = arith.constant 0 : index
    %c0_7 = arith.constant 0 : index
    %7 = vector.load %arg4[%c0_5, %c0_6, %c0_7] : memref<1x64x1xf32, #tpu.memory_space<vmem>>, vector<1x64x1xf32>
    %8 = vector.shape_cast %7 : vector<1x64x1xf32> to vector<64x1xf32>
    %9 = vector.broadcast %8 : vector<64x1xf32> to vector<64x1200xf32>
    %10 = arith.subf %6, %9 : vector<64x1200xf32>
    %cst = arith.constant 0.000000e+00 : f32
    %11 = vector.broadcast %cst : f32 to vector<64x1200xf32>
    %12 = arith.maximumf %10, %11 : vector<64x1200xf32>
    %c0_8 = arith.constant 0 : index
    %c0_9 = arith.constant 0 : index
    %c0_10 = arith.constant 0 : index
    %13 = vector.load %arg5[%c0_8, %c0_9, %c0_10] : memref<1x64x64xf32, #tpu.memory_space<vmem>>, vector<1x64x64xf32>
    %14 = vector.shape_cast %13 : vector<1x64x64xf32> to vector<64x64xf32>
    %cst_11 = arith.constant dense<0.000000e+00> : vector<64x1200xf32>
    %15 = tpu.matmul %14, %12, %cst_11 {dimension_numbers = #tpu.dot_dimension_numbers<[1], [0], [0], [1], [0, 0, 1, 1], [], []>} : vector<64x64xf32>, vector<64x1200xf32>, vector<64x1200xf32> -> vector<64x1200xf32>
    %c0_12 = arith.constant 0 : index
    %c0_13 = arith.constant 0 : index
    %c0_14 = arith.constant 0 : index
    %16 = vector.load %arg6[%c0_12, %c0_13, %c0_14] : memref<1x64x1xf32, #tpu.memory_space<vmem>>, vector<1x64x1xf32>
    %17 = vector.shape_cast %16 : vector<1x64x1xf32> to vector<64x1xf32>
    %18 = vector.broadcast %17 : vector<64x1xf32> to vector<64x1200xf32>
    %19 = arith.subf %15, %18 : vector<64x1200xf32>
    %cst_15 = arith.constant 0.000000e+00 : f32
    %20 = vector.broadcast %cst_15 : f32 to vector<64x1200xf32>
    %21 = arith.maximumf %19, %20 : vector<64x1200xf32>
    %c0_16 = arith.constant 0 : index
    %c0_17 = arith.constant 0 : index
    %c0_18 = arith.constant 0 : index
    %22 = vector.load %arg7[%c0_16, %c0_17, %c0_18] : memref<1x32x64xf32, #tpu.memory_space<vmem>>, vector<1x32x64xf32>
    %23 = vector.shape_cast %22 : vector<1x32x64xf32> to vector<32x64xf32>
    %cst_19 = arith.constant dense<0.000000e+00> : vector<32x1200xf32>
    %24 = tpu.matmul %23, %21, %cst_19 {dimension_numbers = #tpu.dot_dimension_numbers<[1], [0], [0], [1], [0, 0, 1, 1], [], []>} : vector<32x64xf32>, vector<64x1200xf32>, vector<32x1200xf32> -> vector<32x1200xf32>
    %c0_20 = arith.constant 0 : index
    %c0_21 = arith.constant 0 : index
    %c0_22 = arith.constant 0 : index
    %25 = vector.load %arg8[%c0_20, %c0_21, %c0_22] : memref<1x32x1xf32, #tpu.memory_space<vmem>>, vector<1x32x1xf32>
    %26 = vector.shape_cast %25 : vector<1x32x1xf32> to vector<32x1xf32>
    %27 = vector.broadcast %26 : vector<32x1xf32> to vector<32x1200xf32>
    %28 = arith.subf %24, %27 : vector<32x1200xf32>
    %cst_23 = arith.constant 0.000000e+00 : f32
    %29 = vector.broadcast %cst_23 : f32 to vector<32x1200xf32>
    %30 = arith.maximumf %28, %29 : vector<32x1200xf32>
    %c0_24 = arith.constant 0 : index
    %c0_25 = arith.constant 0 : index
    %c0_26 = arith.constant 0 : index
    %31 = vector.load %arg9[%c0_24, %c0_25, %c0_26] : memref<1x32x1xf32, #tpu.memory_space<vmem>>, vector<1x32x1xf32>
    %32 = vector.shape_cast %31 : vector<1x32x1xf32> to vector<32x1xf32>
    %33 = vector.broadcast %32 : vector<32x1xf32> to vector<32x1200xf32>
    %34 = arith.mulf %30, %33 : vector<32x1200xf32>
    %cst_27 = arith.constant dense<0.000000e+00> : vector<1200xf32>
    %35 = vector.multi_reduction <add>, %34, %cst_27 [0] : vector<32x1200xf32> to vector<1200xf32>
    %36 = vector.shape_cast %35 : vector<1200xf32> to vector<1x1200xf32>
    %c0_28 = arith.constant 0 : index
    %c0_29 = arith.constant 0 : index
    %c0_30 = arith.constant 0 : index
    %37 = vector.load %arg10[%c0_28, %c0_29, %c0_30] : memref<1x1x1200xf32, #tpu.memory_space<vmem>>, vector<1x1x1200xf32>
    %38 = vector.shape_cast %37 : vector<1x1x1200xf32> to vector<1x1200xf32>
    %39 = vector.shape_cast %36 : vector<1x1200xf32> to vector<1x1x1200xf32>
    tpu.vector_store %arg10[%c0_28, %c0_29, %c0_30], %39 {strides = array<i32>} : memref<1x1x1200xf32, #tpu.memory_space<vmem>>, vector<1x1x1200xf32>,
    return
  }
  func.func @transform_0(%arg0: i32, %arg1: i32) -> (i32, i32, i32) {
    %c0_i32 = arith.constant 0 : i32
    %c0_i32_0 = arith.constant 0 : i32
    return %arg0, %c0_i32, %arg1 : i32, i32, i32
  }
  func.func @transform_1(%arg0: i32, %arg1: i32) -> (i32, i32, i32) {
    %c0_i32 = arith.constant 0 : i32
    %c0_i32_0 = arith.constant 0 : i32
    %c0_i32_1 = arith.constant 0 : i32
    return %arg0, %c0_i32, %c0_i32_0 : i32, i32, i32
  }
  func.func @transform_2(%arg0: i32, %arg1: i32) -> (i32, i32, i32) {
    %c0_i32 = arith.constant 0 : i32
    %c0_i32_0 = arith.constant 0 : i32
    %c0_i32_1 = arith.constant 0 : i32
    return %arg0, %c0_i32, %c0_i32_0 : i32, i32, i32
  }
  func.func @transform_3(%arg0: i32, %arg1: i32) -> (i32, i32, i32) {
    %c0_i32 = arith.constant 0 : i32
    %c0_i32_0 = arith.constant 0 : i32
    %c0_i32_1 = arith.constant 0 : i32
    return %arg0, %c0_i32, %c0_i32_0 : i32, i32, i32
  }
  func.func @transform_4(%arg0: i32, %arg1: i32) -> (i32, i32, i32) {
    %c0_i32 = arith.constant 0 : i32
    %c0_i32_0 = arith.constant 0 : i32
    %c0_i32_1 = arith.constant 0 : i32
    return %arg0, %c0_i32, %c0_i32_0 : i32, i32, i32
  }
  func.func @transform_5(%arg0: i32, %arg1: i32) -> (i32, i32, i32) {
    %c0_i32 = arith.constant 0 : i32
    %c0_i32_0 = arith.constant 0 : i32
    %c0_i32_1 = arith.constant 0 : i32
    return %arg0, %c0_i32, %c0_i32_0 : i32, i32, i32
  }
  func.func @transform_6(%arg0: i32, %arg1: i32) -> (i32, i32, i32) {
    %c0_i32 = arith.constant 0 : i32
    %c0_i32_0 = arith.constant 0 : i32
    %c0_i32_1 = arith.constant 0 : i32
    return %arg0, %c0_i32, %c0_i32_0 : i32, i32, i32
  }
  func.func @transform_7(%arg0: i32, %arg1: i32) -> (i32, i32, i32) {
    %c0_i32 = arith.constant 0 : i32
    %c0_i32_0 = arith.constant 0 : i32
    %c0_i32_1 = arith.constant 0 : i32
    return %arg0, %c0_i32, %c0_i32_0 : i32, i32, i32
  }
  func.func @transform_8(%arg0: i32, %arg1: i32) -> (i32, i32, i32) {
    %c0_i32 = arith.constant 0 : i32
    %c0_i32_0 = arith.constant 0 : i32
    return %arg0, %c0_i32, %arg1 : i32, i32, i32
  }
}

</mosaic_0001>

<llo_original>
// kernel: tpu_custom_call.1
$region0: #{tpu_custom_call.1}
  #allocation0 [shape = 'u32[]', space=smem, size = 0x4, offset = 0x4, fixed_abs, tag = 'smem constant byte address 0x4 - core index']
  #allocation1 [shape = 'u32[144,128]{1,0:T(1,128)}', space=vmem, size = 0x12000, scoped, tag = 'internal scratch']
  %s0 = inlined_call_operand.vmem [shape: f32[8,1,1200], index: 0, kind: input, shape index: {}]
  %s1 = inlined_call_operand.vmem [shape: f32[8,64,1], index: 1, kind: input, shape index: {}]
  %s2 = inlined_call_operand.vmem [shape: f32[8,64,1], index: 2, kind: input, shape index: {}]
  %s3 = inlined_call_operand.vmem [shape: f32[8,64,64], index: 3, kind: input, shape index: {}]
  %s4 = inlined_call_operand.vmem [shape: f32[8,64,1], index: 4, kind: input, shape index: {}]
  %s5 = inlined_call_operand.vmem [shape: f32[8,32,64], index: 5, kind: input, shape index: {}]
  %s6 = inlined_call_operand.vmem [shape: f32[8,32,1], index: 6, kind: input, shape index: {}]
  %s7 = inlined_call_operand.vmem [shape: f32[8,32,1], index: 7, kind: input, shape index: {}]
  %s8 = inlined_call_operand.hbm [shape: f32[8,1,1200], index: 8, kind: output, shape index: {}]
  %s9 = sld [smem:[#allocation0]]
  $region65: #{tpu_custom_call.1} parent=0
    _
  %s11 = ssub.s32 1, %s9
  %s12 = scalar_select 0, %s11, %s9
  $region1: #{tpu_custom_call.1} parent=0
    #allocation2 [shape = 'u8[10240]{0}', space=vmem, size = 0x2800, scoped, tag = 'output window, operand 0']
    #allocation3 [shape = 's32[2]{0}', space=sflag, size = 0x8, scoped, tag = 'scoped memory for tpu_custom_call.1']
    %13 = vsyncpa [#allocation3], 0
    %s14 = scalar_lea.sflag [#allocation3], 1
    %15 = vsyncpa %s14, 0
    loop: start=0, step=1, limit=10
    $region2: #{tpu_custom_call.1} parent=1 // loop_pre_header
      _
    $region3: #{tpu_custom_call.1} parent=1 // loop_header
      %s17 = sphi 0, %s21
      %p18 = scmp.ge.s32.totalorder %s17, 10
      %s24 = sphi 0, %s36
      %s25 = sphi 0, %s32
      %s26 = sphi 0, %s24
      %s27 = sphi 0, %s25
      %s28 = sphi 0, %s26
      %s29 = sphi 0, %s27
      %s41 = sphi 0, %s43
      %s44 = sphi 0, %s41
      %s45 = sphi 0, %s44
      %s61 = sphi 0, %s45
      %s67 = sphi 0, %s69
      %s70 = sphi 0, %s67
      %s71 = sphi 0, %s70
      %s87 = sphi 0, %s71
      %s93 = sphi 0, %s95
      %s96 = sphi 0, %s93
      %s97 = sphi 0, %s96
      %s113 = sphi 0, %s97
      %s119 = sphi 0, %s121
      %s122 = sphi 0, %s119
      %s123 = sphi 0, %s122
      %s139 = sphi 0, %s123
      %s145 = sphi 0, %s147
      %s148 = sphi 0, %s145
      %s149 = sphi 0, %s148
      %s165 = sphi 0, %s149
      %s171 = sphi 0, %s173
      %s174 = sphi 0, %s171
      %s175 = sphi 0, %s174
      %s191 = sphi 0, %s175
      %s197 = sphi 0, %s199
      %s200 = sphi 0, %s197
      %s201 = sphi 0, %s200
      %s217 = sphi 0, %s201
      %s223 = sphi 0, %s225
      %s226 = sphi 0, %s223
      %s227 = sphi 0, %s226
      %s243 = sphi 0, %s227
      %s251 = sphi 0, %s253
      %s254 = sphi 0, %s251
      %s255 = sphi 0, %s254
      %s271 = sphi 0, %s255
    $region4: #{tpu_custom_call.1} parent=1 // loop_header_branch
      %20 = sbr.rel (%p18) target = $region8
    $region5: #{tpu_custom_call.1} parent=1 // loop_body
      %s22 = ssub.s32 %s17, 1
      %s23 = ssub.s32 %s17, 2
      %s30 = sadd.s32 1, %s25
      %p31 = scmp.ge.s32.totalorder %s30, 1
      %s32 = scalar_select %p31, 0, %s30
      %s33 = sadd.s32 1, %s24
      %s34 = scalar_select %p31, %s33, %s24
      %p35 = scmp.ge.s32.totalorder %s34, 8
      %s36 = scalar_select %p35, 0, %s34
      %s37 = ssub.s32 %s24, %s36
      %s38 = ssub.s32 %s25, %s32
      %s39 = sor.u32 %s37, %s38
      %p40 = scmp.eq.s32.totalorder %s39, 0
      %s42 = sadd.s32 %s41, 1
      %s43 = scalar_select %p40, %s41, %s42
      %p46 = pneg %p40
      %p47 = scmp.eq.s32.totalorder %s17, 7
      %p48 = por %p46, %p47
      %p49 = scmp.ne.s32.totalorder %s41, %s44
      %p50 = scmp.eq.s32.totalorder %s17, 0
      %p51 = por %p49, %p50
      %p52 = scmp.ne.s32.totalorder %s41, %s44
      %p53 = scmp.eq.s32.totalorder %s22, 7
      %p54 = por %p52, %p53
      %p55 = scmp.ne.s32.totalorder %s44, %s45
      %p56 = scmp.eq.s32.totalorder %s22, 0
      %p57 = por %p55, %p56
      %p58 = scmp.ne.s32.totalorder %s44, %s45
      %p59 = scmp.eq.s32.totalorder %s23, 7
      %p60 = por %p58, %p59
      %p62 = scmp.ne.s32.totalorder %s45, %s61
      %p63 = scmp.eq.s32.totalorder %s23, 0
      %p64 = por %p62, %p63
      %s65 = ssub.s32 %s24, %s36
      %p66 = scmp.eq.s32.totalorder %s65, 0
      %s68 = sadd.s32 %s67, 1
      %s69 = scalar_select %p66, %s67, %s68
      %p72 = pneg %p66
      %p73 = scmp.eq.s32.totalorder %s17, 7
      %p74 = por %p72, %p73
      %p75 = scmp.ne.s32.totalorder %s67, %s70
      %p76 = scmp.eq.s32.totalorder %s17, 0
      %p77 = por %p75, %p76
      %p78 = scmp.ne.s32.totalorder %s67, %s70
      %p79 = scmp.eq.s32.totalorder %s22, 7
      %p80 = por %p78, %p79
      %p81 = scmp.ne.s32.totalorder %s70, %s71
      %p82 = scmp.eq.s32.totalorder %s22, 0
      %p83 = por %p81, %p82
      %p84 = scmp.ne.s32.totalorder %s70, %s71
      %p85 = scmp.eq.s32.totalorder %s23, 7
      %p86 = por %p84, %p85
      %p88 = scmp.ne.s32.totalorder %s71, %s87
      %p89 = scmp.eq.s32.totalorder %s23, 0
      %p90 = por %p88, %p89
      %s91 = ssub.s32 %s24, %s36
      %p92 = scmp.eq.s32.totalorder %s91, 0
      %s94 = sadd.s32 %s93, 1
      %s95 = scalar_select %p92, %s93, %s94
      %p98 = pneg %p92
      %p99 = scmp.eq.s32.totalorder %s17, 7
      %p100 = por %p98, %p99
      %p101 = scmp.ne.s32.totalorder %s93, %s96
      %p102 = scmp.eq.s32.totalorder %s17, 0
      %p103 = por %p101, %p102
      %p104 = scmp.ne.s32.totalorder %s93, %s96
      %p105 = scmp.eq.s32.totalorder %s22, 7
      %p106 = por %p104, %p105
      %p107 = scmp.ne.s32.totalorder %s96, %s97
      %p108 = scmp.eq.s32.totalorder %s22, 0
      %p109 = por %p107, %p108
      %p110 = scmp.ne.s32.totalorder %s96, %s97
      %p111 = scmp.eq.s32.totalorder %s23, 7
      %p112 = por %p110, %p111
      %p114 = scmp.ne.s32.totalorder %s97, %s113
      %p115 = scmp.eq.s32.totalorder %s23, 0
      %p116 = por %p114, %p115
      %s117 = ssub.s32 %s24, %s36
      %p118 = scmp.eq.s32.totalorder %s117, 0
      %s120 = sadd.s32 %s119, 1
      %s121 = scalar_select %p118, %s119, %s120
      %p124 = pneg %p118
      %p125 = scmp.eq.s32.totalorder %s17, 7
      %p126 = por %p124, %p125
      %p127 = scmp.ne.s32.totalorder %s119, %s122
      %p128 = scmp.eq.s32.totalorder %s17, 0
      %p129 = por %p127, %p128
      %p130 = scmp.ne.s32.totalorder %s119, %s122
      %p131 = scmp.eq.s32.totalorder %s22, 7
      %p132 = por %p130, %p131
      %p133 = scmp.ne.s32.totalorder %s122, %s123
      %p134 = scmp.eq.s32.totalorder %s22, 0
      %p135 = por %p133, %p134
      %p136 = scmp.ne.s32.totalorder %s122, %s123
      %p137 = scmp.eq.s32.totalorder %s23, 7
      %p138 = por %p136, %p137
      %p140 = scmp.ne.s32.totalorder %s123, %s139
      %p141 = scmp.eq.s32.totalorder %s23, 0
      %p142 = por %p140, %p141
      %s143 = ssub.s32 %s24, %s36
      %p144 = scmp.eq.s32.totalorder %s143, 0
      %s146 = sadd.s32 %s145, 1
      %s147 = scalar_select %p144, %s145, %s146
      %p150 = pneg %p144
      %p151 = scmp.eq.s32.totalorder %s17, 7
      %p152 = por %p150, %p151
      %p153 = scmp.ne.s32.totalorder %s145, %s148
      %p154 = scmp.eq.s32.totalorder %s17, 0
      %p155 = por %p153, %p154
      %p156 = scmp.ne.s32.totalorder %s145, %s148
      %p157 = scmp.eq.s32.totalorder %s22, 7
      %p158 = por %p156, %p157
      %p159 = scmp.ne.s32.totalorder %s148, %s149
      %p160 = scmp.eq.s32.totalorder %s22, 0
      %p161 = por %p159, %p160
      %p162 = scmp.ne.s32.totalorder %s148, %s149
      %p163 = scmp.eq.s32.totalorder %s23, 7
      %p164 = por %p162, %p163
      %p166 = scmp.ne.s32.totalorder %s149, %s165
      %p167 = scmp.eq.s32.totalorder %s23, 0
      %p168 = por %p166, %p167
      %s169 = ssub.s32 %s24, %s36
      %p170 = scmp.eq.s32.totalorder %s169, 0
      %s172 = sadd.s32 %s171, 1
      %s173 = scalar_select %p170, %s171, %s172
      %p176 = pneg %p170
      %p177 = scmp.eq.s32.totalorder %s17, 7
      %p178 = por %p176, %p177
      %p179 = scmp.ne.s32.totalorder %s171, %s174
      %p180 = scmp.eq.s32.totalorder %s17, 0
      %p181 = por %p179, %p180
      %p182 = scmp.ne.s32.totalorder %s171, %s174
      %p183 = scmp.eq.s32.totalorder %s22, 7
      %p184 = por %p182, %p183
      %p185 = scmp.ne.s32.totalorder %s174, %s175
      %p186 = scmp.eq.s32.totalorder %s22, 0
      %p187 = por %p185, %p186
      %p188 = scmp.ne.s32.totalorder %s174, %s175
      %p189 = scmp.eq.s32.totalorder %s23, 7
      %p190 = por %p188, %p189
      %p192 = scmp.ne.s32.totalorder %s175, %s191
      %p193 = scmp.eq.s32.totalorder %s23, 0
      %p194 = por %p192, %p193
      %s195 = ssub.s32 %s24, %s36
      %p196 = scmp.eq.s32.totalorder %s195, 0
      %s198 = sadd.s32 %s197, 1
      %s199 = scalar_select %p196, %s197, %s198
      %p202 = pneg %p196
      %p203 = scmp.eq.s32.totalorder %s17, 7
      %p204 = por %p202, %p203
      %p205 = scmp.ne.s32.totalorder %s197, %s200
      %p206 = scmp.eq.s32.totalorder %s17, 0
      %p207 = por %p205, %p206
      %p208 = scmp.ne.s32.totalorder %s197, %s200
      %p209 = scmp.eq.s32.totalorder %s22, 7
      %p210 = por %p208, %p209
      %p211 = scmp.ne.s32.totalorder %s200, %s201
      %p212 = scmp.eq.s32.totalorder %s22, 0
      %p213 = por %p211, %p212
      %p214 = scmp.ne.s32.totalorder %s200, %s201
      %p215 = scmp.eq.s32.totalorder %s23, 7
      %p216 = por %p214, %p215
      %p218 = scmp.ne.s32.totalorder %s201, %s217
      %p219 = scmp.eq.s32.totalorder %s23, 0
      %p220 = por %p218, %p219
      %s221 = ssub.s32 %s24, %s36
      %p222 = scmp.eq.s32.totalorder %s221, 0
      %s224 = sadd.s32 %s223, 1
      %s225 = scalar_select %p222, %s223, %s224
      %p228 = pneg %p222
      %p229 = scmp.eq.s32.totalorder %s17, 7
      %p230 = por %p228, %p229
      %p231 = scmp.ne.s32.totalorder %s223, %s226
      %p232 = scmp.eq.s32.totalorder %s17, 0
      %p233 = por %p231, %p232
      %p234 = scmp.ne.s32.totalorder %s223, %s226
      %p235 = scmp.eq.s32.totalorder %s22, 7
      %p236 = por %p234, %p235
      %p237 = scmp.ne.s32.totalorder %s226, %s227
      %p238 = scmp.eq.s32.totalorder %s22, 0
      %p239 = por %p237, %p238
      %p240 = scmp.ne.s32.totalorder %s226, %s227
      %p241 = scmp.eq.s32.totalorder %s23, 7
      %p242 = por %p240, %p241
      %p244 = scmp.ne.s32.totalorder %s227, %s243
      %p245 = scmp.eq.s32.totalorder %s23, 0
      %p246 = por %p244, %p245
      %s247 = ssub.s32 %s24, %s36
      %s248 = ssub.s32 %s25, %s32
      %s249 = sor.u32 %s247, %s248
      %p250 = scmp.eq.s32.totalorder %s249, 0
      %s252 = sadd.s32 %s251, 1
      %s253 = scalar_select %p250, %s251, %s252
      %p256 = pneg %p250
      %p257 = scmp.eq.s32.totalorder %s17, 7
      %p258 = por %p256, %p257
      %p259 = scmp.ne.s32.totalorder %s251, %s254
      %p260 = scmp.eq.s32.totalorder %s17, 0
      %p261 = por %p259, %p260
      %p262 = scmp.ne.s32.totalorder %s251, %s254
      %p263 = scmp.eq.s32.totalorder %s22, 7
      %p264 = por %p262, %p263
      %p265 = scmp.ne.s32.totalorder %s254, %s255
      %p266 = scmp.eq.s32.totalorder %s22, 0
      %p267 = por %p265, %p266
      %p268 = scmp.ne.s32.totalorder %s254, %s255
      %p269 = scmp.eq.s32.totalorder %s23, 7
      %p270 = por %p268, %p269
      %p272 = scmp.ne.s32.totalorder %s255, %s271
      %p273 = scmp.eq.s32.totalorder %s23, 0
      %p274 = por %p272, %p273
      %p275 = scmp.le.s32.totalorder 1, %s17
      %p276 = scmp.lt.s32.totalorder %s17, 9
      %p277 = pnand %p275, %p276
      %p278 = pneg %p277
      // Predicated region
      $region9: #{tpu_custom_call.1} parent=5 // pred_check
        _
      $region10: #{tpu_custom_call.1} parent=5 // pred_check_branch
        %280 = sbr.rel (%p277) target = $region12
      $region11: #{tpu_custom_call.1} parent=5 // pred_region
        %s281 = ssub.s32 %s17, 1
      $region12: #{tpu_custom_call.1} parent=5 // pred_fallthru
        _
      %p282 = scmp.lt.s32.totalorder %s17, 8
      // Predicated region
      $region13: #{tpu_custom_call.1} parent=5 // pred_check
        %p283 = pneg %p282
      $region14: #{tpu_custom_call.1} parent=5 // pred_check_branch
        %285 = sbr.rel (%p283) target = $region16
      $region15: #{tpu_custom_call.1} parent=5 // pred_region
        // Predicated region
        $region17: #{tpu_custom_call.1} parent=15 // pred_check
          %p286 = pneg %p51
        $region18: #{tpu_custom_call.1} parent=15 // pred_check_branch
          %288 = sbr.rel (%p286) target = $region20
        $region19: #{tpu_custom_call.1} parent=15 // pred_region
          %s289 = smul.u32 10, %s25
          %p290 = scmp.lt.s32.totalorder %s24, 7
          %s291 = scalar_select %p290, %s24, 7
          %p292 = scmp.lt.s32.totalorder %s289, 9
          %s293 = scalar_select %p292, %s289, 9
          %s294 = smul.addr %s291, 10
          %s295 = sadd.s32 %s293, %s294
          %s296 = scalar_lea.vmem %s0, %s295
          %s297 = smul.u32 10, %s25
        $region20: #{tpu_custom_call.1} parent=15 // pred_fallthru
          _
        // Predicated region
        $region21: #{tpu_custom_call.1} parent=15 // pred_check
          %p298 = pneg %p77
        $region22: #{tpu_custom_call.1} parent=15 // pred_check_branch
          %300 = sbr.rel (%p298) target = $region24
        $region23: #{tpu_custom_call.1} parent=15 // pred_region
          %p301 = scmp.lt.s32.totalorder %s24, 7
          %s302 = scalar_select %p301, %s24, 7
          %s303 = smul.addr %s302, 8
          %s304 = smul.addr %s303, 8
          %s305 = scalar_lea.vmem %s1, %s304
        $region24: #{tpu_custom_call.1} parent=15 // pred_fallthru
          _
        // Predicated region
        $region25: #{tpu_custom_call.1} parent=15 // pred_check
          %p306 = pneg %p103
        $region26: #{tpu_custom_call.1} parent=15 // pred_check_branch
          %308 = sbr.rel (%p306) target = $region28
        $region27: #{tpu_custom_call.1} parent=15 // pred_region
          %p309 = scmp.lt.s32.totalorder %s24, 7
          %s310 = scalar_select %p309, %s24, 7
          %s311 = smul.addr %s310, 8
          %s312 = smul.addr %s311, 8
          %s313 = scalar_lea.vmem %s2, %s312
        $region28: #{tpu_custom_call.1} parent=15 // pred_fallthru
          _
        // Predicated region
        $region29: #{tpu_custom_call.1} parent=15 // pred_check
          %p314 = pneg %p129
        $region30: #{tpu_custom_call.1} parent=15 // pred_check_branch
          %316 = sbr.rel (%p314) target = $region32
        $region31: #{tpu_custom_call.1} parent=15 // pred_region
          %p317 = scmp.lt.s32.totalorder %s24, 7
          %s318 = scalar_select %p317, %s24, 7
          %s319 = smul.addr %s318, 8
          %s320 = smul.addr %s319, 8
          %s321 = scalar_lea.vmem %s3, %s320
        $region32: #{tpu_custom_call.1} parent=15 // pred_fallthru
          _
        // Predicated region
        $region33: #{tpu_custom_call.1} parent=15 // pred_check
          %p322 = pneg %p155
        $region34: #{tpu_custom_call.1} parent=15 // pred_check_branch
          %324 = sbr.rel (%p322) target = $region36
        $region35: #{tpu_custom_call.1} parent=15 // pred_region
          %p325 = scmp.lt.s32.totalorder %s24, 7
          %s326 = scalar_select %p325, %s24, 7
          %s327 = smul.addr %s326, 8
          %s328 = smul.addr %s327, 8
          %s329 = scalar_lea.vmem %s4, %s328
        $region36: #{tpu_custom_call.1} parent=15 // pred_fallthru
          _
        // Predicated region
        $region37: #{tpu_custom_call.1} parent=15 // pred_check
          %p330 = pneg %p181
        $region38: #{tpu_custom_call.1} parent=15 // pred_check_branch
          %332 = sbr.rel (%p330) target = $region40
        $region39: #{tpu_custom_call.1} parent=15 // pred_region
          %p333 = scmp.lt.s32.totalorder %s24, 7
          %s334 = scalar_select %p333, %s24, 7
          %s335 = smul.addr %s334, 4
          %s336 = smul.addr %s335, 8
          %s337 = scalar_lea.vmem %s5, %s336
        $region40: #{tpu_custom_call.1} parent=15 // pred_fallthru
          _
        // Predicated region
        $region41: #{tpu_custom_call.1} parent=15 // pred_check
          %p338 = pneg %p207
        $region42: #{tpu_custom_call.1} parent=15 // pred_check_branch
          %340 = sbr.rel (%p338) target = $region44
        $region43: #{tpu_custom_call.1} parent=15 // pred_region
          %p341 = scmp.lt.s32.totalorder %s24, 7
          %s342 = scalar_select %p341, %s24, 7
          %s343 = smul.addr %s342, 4
          %s344 = smul.addr %s343, 8
          %s345 = scalar_lea.vmem %s6, %s344
        $region44: #{tpu_custom_call.1} parent=15 // pred_fallthru
          _
        // Predicated region
        $region45: #{tpu_custom_call.1} parent=15 // pred_check
          %p346 = pneg %p233
        $region46: #{tpu_custom_call.1} parent=15 // pred_check_branch
          %348 = sbr.rel (%p346) target = $region48
        $region47: #{tpu_custom_call.1} parent=15 // pred_region
          %p349 = scmp.lt.s32.totalorder %s24, 7
          %s350 = scalar_select %p349, %s24, 7
          %s351 = smul.addr %s350, 4
          %s352 = smul.addr %s351, 8
          %s353 = scalar_lea.vmem %s7, %s352
        $region48: #{tpu_custom_call.1} parent=15 // pred_fallthru
          _
      $region16: #{tpu_custom_call.1} parent=5 // pred_fallthru
        _
      %p354 = scmp.le.s32.totalorder 1, %s17
      %p355 = scmp.lt.s32.totalorder %s17, 9
      %p356 = pnand %p354, %p355
      %p357 = pneg %p356
      // Predicated region
      $region49: #{tpu_custom_call.1} parent=5 // pred_check
        _
      $region50: #{tpu_custom_call.1} parent=5 // pred_check_branch
        %359 = sbr.rel (%p356) target = $region52
      $region51: #{tpu_custom_call.1} parent=5 // pred_region
        %s360 = ssub.s32 %s17, 1
        %s361 = smul.u32 10, %s27
        %p362 = scmp.lt.s32.totalorder %s26, 7
        %s363 = scalar_select %p362, %s26, 7
        %p364 = scmp.lt.s32.totalorder %s361, 9
        %s365 = scalar_select %p364, %s361, 9
        %s366 = smul.addr %s363, 10
        %s367 = sadd.s32 %s365, %s366
        %s368 = scalar_lea.vmem %s0, %s367
        %p369 = pneg %p57
        %p370 = pneg %p54
        %p371 = scmp.lt.s32.totalorder %s26, 7
        %s372 = scalar_select %p371, %s26, 7
        %s373 = smul.addr %s372, 8
        %s374 = smul.addr %s373, 8
        %s375 = scalar_lea.vmem %s1, %s374
        %p376 = pneg %p83
        %p377 = pneg %p80
        %p378 = scmp.lt.s32.totalorder %s26, 7
        %s379 = scalar_select %p378, %s26, 7
        %s380 = smul.addr %s379, 8
        %s381 = smul.addr %s380, 8
        %s382 = scalar_lea.vmem %s2, %s381
        %p383 = pneg %p109
        %p384 = pneg %p106
        %p385 = scmp.lt.s32.totalorder %s26, 7
        %s386 = scalar_select %p385, %s26, 7
        %s387 = smul.addr %s386, 8
        %s388 = smul.addr %s387, 8
        %s389 = scalar_lea.vmem %s3, %s388
        %p390 = pneg %p135
        %p391 = pneg %p132
        %p392 = scmp.lt.s32.totalorder %s26, 7
        %s393 = scalar_select %p392, %s26, 7
        %s394 = smul.addr %s393, 8
        %s395 = smul.addr %s394, 8
        %s396 = scalar_lea.vmem %s4, %s395
        %p397 = pneg %p161
        %p398 = pneg %p158
        %p399 = scmp.lt.s32.totalorder %s26, 7
        %s400 = scalar_select %p399, %s26, 7
        %s401 = smul.addr %s400, 4
        %s402 = smul.addr %s401, 8
        %s403 = scalar_lea.vmem %s5, %s402
        %p404 = pneg %p187
        %p405 = pneg %p184
        %p406 = scmp.lt.s32.totalorder %s26, 7
        %s407 = scalar_select %p406, %s26, 7
        %s408 = smul.addr %s407, 4
        %s409 = smul.addr %s408, 8
        %s410 = scalar_lea.vmem %s6, %s409
        %p411 = pneg %p213
        %p412 = pneg %p210
        %p413 = scmp.lt.s32.totalorder %s26, 7
        %s414 = scalar_select %p413, %s26, 7
        %s415 = smul.addr %s414, 4
        %s416 = smul.addr %s415, 8
        %s417 = scalar_lea.vmem %s7, %s416
        %p418 = pneg %p239
        %p419 = pneg %p236
        %p420 = pneg %p267
        %p421 = pneg %p264
        %s422 = sand.u32 %s254, 1
        %s423 = scalar_lea.sflag [#allocation3], %s422
        %s424 = sand.u32 %s254, 1
        %s425 = smul.addr %s424, 10
        %s426 = scalar_lea.vmem [#allocation2], %s425
        %s427 = smul.u32 10, %s27
        %p428 = scmp.lt.s32.totalorder %s26, 7
        %s429 = scalar_select %p428, %s26, 7
        %p430 = scmp.lt.s32.totalorder %s427, 9
        %s431 = scalar_select %p430, %s427, 9
        %s432 = smul.addr %s429, 10
        %s433 = sadd.s32 %s431, %s432
        %s434 = scalar_lea.vmem %s0, %s433
        %s435 = smul.u32 10, %s27
        %p436 = scmp.lt.s32.totalorder %s26, 7
        %s437 = scalar_select %p436, %s26, 7
        %s438 = smul.addr %s437, 8
        %s439 = smul.addr %s438, 8
        %s440 = scalar_lea.vmem %s1, %s439
        %p441 = scmp.lt.s32.totalorder %s26, 7
        %s442 = scalar_select %p441, %s26, 7
        %s443 = smul.addr %s442, 8
        %s444 = smul.addr %s443, 8
        %s445 = scalar_lea.vmem %s2, %s444
        %p446 = scmp.lt.s32.totalorder %s26, 7
        %s447 = scalar_select %p446, %s26, 7
        %s448 = smul.addr %s447, 8
        %s449 = smul.addr %s448, 8
        %s450 = scalar_lea.vmem %s3, %s449
        %p451 = scmp.lt.s32.totalorder %s26, 7
        %s452 = scalar_select %p451, %s26, 7
        %s453 = smul.addr %s452, 8
        %s454 = smul.addr %s453, 8
        %s455 = scalar_lea.vmem %s4, %s454
        %p456 = scmp.lt.s32.totalorder %s26, 7
        %s457 = scalar_select %p456, %s26, 7
        %s458 = smul.addr %s457, 4
        %s459 = smul.addr %s458, 8
        %s460 = scalar_lea.vmem %s5, %s459
        %p461 = scmp.lt.s32.totalorder %s26, 7
        %s462 = scalar_select %p461, %s26, 7
        %s463 = smul.addr %s462, 4
        %s464 = smul.addr %s463, 8
        %s465 = scalar_lea.vmem %s6, %s464
        %p466 = scmp.lt.s32.totalorder %s26, 7
        %s467 = scalar_select %p466, %s26, 7
        %s468 = smul.addr %s467, 4
        %s469 = smul.addr %s468, 8
        %s470 = scalar_lea.vmem %s7, %s469
        %s471 = smul.u32 10, %s27
        %v472 = vld [vmem:[%s434] sm:$0xff]
        %v473 = vld [vmem:[%s434 + $0x8] sm:$0x3]
        %v474 = vld [vmem:[%s440] sm:$0xff]
        %v475 = vld [vmem:[%s440 + $0x8] sm:$0xff]
        %v476 = vld [vmem:[%s440 + $0x10] sm:$0xff]
        %v477 = vld [vmem:[%s440 + $0x18] sm:$0xff]
        %v478 = vld [vmem:[%s440 + $0x20] sm:$0xff]
        %v479 = vld [vmem:[%s440 + $0x28] sm:$0xff]
        %v480 = vld [vmem:[%s440 + $0x30] sm:$0xff]
        %v481 = vld [vmem:[%s440 + $0x38] sm:$0xff]
        %483 = vset.pattern.permute.xlu0 0
        %484 = vperm.xlu0 %483, %v474
        %v485 = vpop.permute.xlu0 %484
        %488 = vset.pattern.permute.xlu0 0
        %489 = vperm.xlu0 %488, %v475
        %v490 = vpop.permute.xlu0 %489
        %493 = vset.pattern.permute.xlu0 0
        %494 = vperm.xlu0 %493, %v476
        %v495 = vpop.permute.xlu0 %494
        %498 = vset.pattern.permute.xlu0 0
        %499 = vperm.xlu0 %498, %v477
        %v500 = vpop.permute.xlu0 %499
        %503 = vset.pattern.permute.xlu0 0
        %504 = vperm.xlu0 %503, %v478
        %v505 = vpop.permute.xlu0 %504
        %508 = vset.pattern.permute.xlu0 0
        %509 = vperm.xlu0 %508, %v479
        %v510 = vpop.permute.xlu0 %509
        %513 = vset.pattern.permute.xlu0 0
        %514 = vperm.xlu0 %513, %v480
        %v515 = vpop.permute.xlu0 %514
        %518 = vset.pattern.permute.xlu0 0
        %519 = vperm.xlu0 %518, %v481
        %v520 = vpop.permute.xlu0 %519
        %v524 = vlaneseq
        %v525 = vshrl.u32 %v524, 7
        %v526 = vsub.s32 0, %v525
        %v527 = vrot.slane %v472, %v526
        %v528 = vlaneseq
        %v529 = vshrl.u32 %v528, 7
        %v530 = vsub.s32 1, %v529
        %v531 = vrot.slane %v472, %v530
        %v532 = vlaneseq
        %v533 = vshrl.u32 %v532, 7
        %v534 = vsub.s32 2, %v533
        %v535 = vrot.slane %v472, %v534
        %v536 = vlaneseq
        %v537 = vshrl.u32 %v536, 7
        %v538 = vsub.s32 3, %v537
        %v539 = vrot.slane %v472, %v538
        %v540 = vlaneseq
        %v541 = vshrl.u32 %v540, 7
        %v542 = vsub.s32 4, %v541
        %v543 = vrot.slane %v472, %v542
        %v544 = vlaneseq
        %v545 = vshrl.u32 %v544, 7
        %v546 = vsub.s32 5, %v545
        %v547 = vrot.slane %v472, %v546
        %v548 = vlaneseq
        %v549 = vshrl.u32 %v548, 7
        %v550 = vsub.s32 6, %v549
        %v551 = vrot.slane %v472, %v550
        %v552 = vlaneseq
        %v553 = vshrl.u32 %v552, 7
        %v554 = vsub.s32 7, %v553
        %v555 = vrot.slane %v472, %v554
        %v556 = vlaneseq
        %v557 = vshrl.u32 %v556, 7
        %v558 = vsub.s32 0, %v557
        %v559 = vrot.slane %v473, %v558
        %v560 = vlaneseq
        %v561 = vshrl.u32 %v560, 7
        %v562 = vsub.s32 1, %v561
        %v563 = vrot.slane %v473, %v562
        %v574 = vmul.f32 %v485, %v527
        %v575 = vmul.f32 %v485, %v531
        %v576 = vmul.f32 %v485, %v535
        %v577 = vmul.f32 %v485, %v539
        %v578 = vmul.f32 %v485, %v543
        %v579 = vmul.f32 %v485, %v547
        %v580 = vmul.f32 %v485, %v551
        %v581 = vmul.f32 %v485, %v555
        %v582 = vmul.f32 %v485, %v559
        %v583 = vmul.f32 %v485, %v563
        %v584 = vmul.f32 %v490, %v527
        %v585 = vmul.f32 %v490, %v531
        %v586 = vmul.f32 %v490, %v535
        %v587 = vmul.f32 %v490, %v539
        %v588 = vmul.f32 %v490, %v543
        %v589 = vmul.f32 %v490, %v547
        %v590 = vmul.f32 %v490, %v551
        %v591 = vmul.f32 %v490, %v555
        %v592 = vmul.f32 %v490, %v559
        %v593 = vmul.f32 %v490, %v563
        %v594 = vmul.f32 %v495, %v527
        %v595 = vmul.f32 %v495, %v531
        %v596 = vmul.f32 %v495, %v535
        %v597 = vmul.f32 %v495, %v539
        %v598 = vmul.f32 %v495, %v543
        %v599 = vmul.f32 %v495, %v547
        %v600 = vmul.f32 %v495, %v551
        %v601 = vmul.f32 %v495, %v555
        %v602 = vmul.f32 %v495, %v559
        %v603 = vmul.f32 %v495, %v563
        %v604 = vmul.f32 %v500, %v527
        %v605 = vmul.f32 %v500, %v531
        %v606 = vmul.f32 %v500, %v535
        %v607 = vmul.f32 %v500, %v539
        %v608 = vmul.f32 %v500, %v543
        %v609 = vmul.f32 %v500, %v547
        %v610 = vmul.f32 %v500, %v551
        %v611 = vmul.f32 %v500, %v555
        %v612 = vmul.f32 %v500, %v559
        %v613 = vmul.f32 %v500, %v563
        %v614 = vmul.f32 %v505, %v527
        %v615 = vmul.f32 %v505, %v531
        %v616 = vmul.f32 %v505, %v535
        %v617 = vmul.f32 %v505, %v539
        %v618 = vmul.f32 %v505, %v543
        %v619 = vmul.f32 %v505, %v547
        %v620 = vmul.f32 %v505, %v551
        %v621 = vmul.f32 %v505, %v555
        %v622 = vmul.f32 %v505, %v559
        %v623 = vmul.f32 %v505, %v563
        %v624 = vmul.f32 %v510, %v527
        %v625 = vmul.f32 %v510, %v531
        %v626 = vmul.f32 %v510, %v535
        %v627 = vmul.f32 %v510, %v539
        %v628 = vmul.f32 %v510, %v543
        %v629 = vmul.f32 %v510, %v547
        %v630 = vmul.f32 %v510, %v551
        %v631 = vmul.f32 %v510, %v555
        %v632 = vmul.f32 %v510, %v559
        %v633 = vmul.f32 %v510, %v563
        %v634 = vmul.f32 %v515, %v527
        %v635 = vmul.f32 %v515, %v531
        %v636 = vmul.f32 %v515, %v535
        %v637 = vmul.f32 %v515, %v539
        %v638 = vmul.f32 %v515, %v543
        %v639 = vmul.f32 %v515, %v547
        %v640 = vmul.f32 %v515, %v551
        %v641 = vmul.f32 %v515, %v555
        %v642 = vmul.f32 %v515, %v559
        %v643 = vmul.f32 %v515, %v563
        %v644 = vmul.f32 %v520, %v527
        %v645 = vmul.f32 %v520, %v531
        %v646 = vmul.f32 %v520, %v535
        %v647 = vmul.f32 %v520, %v539
        %v648 = vmul.f32 %v520, %v543
        %v649 = vmul.f32 %v520, %v547
        %v650 = vmul.f32 %v520, %v551
        %v651 = vmul.f32 %v520, %v555
        %v652 = vmul.f32 %v520, %v559
        %v653 = vmul.f32 %v520, %v563
        %v654 = vld [vmem:[%s445] sm:$0xff]
        %v655 = vld [vmem:[%s445 + $0x8] sm:$0xff]
        %v656 = vld [vmem:[%s445 + $0x10] sm:$0xff]
        %v657 = vld [vmem:[%s445 + $0x18] sm:$0xff]
        %v658 = vld [vmem:[%s445 + $0x20] sm:$0xff]
        %v659 = vld [vmem:[%s445 + $0x28] sm:$0xff]
        %v660 = vld [vmem:[%s445 + $0x30] sm:$0xff]
        %v661 = vld [vmem:[%s445 + $0x38] sm:$0xff]
        %663 = vset.pattern.permute.xlu0 0
        %664 = vperm.xlu0 %663, %v654
        %v665 = vpop.permute.xlu0 %664
        %668 = vset.pattern.permute.xlu0 0
        %669 = vperm.xlu0 %668, %v655
        %v670 = vpop.permute.xlu0 %669
        %673 = vset.pattern.permute.xlu0 0
        %674 = vperm.xlu0 %673, %v656
        %v675 = vpop.permute.xlu0 %674
        %678 = vset.pattern.permute.xlu0 0
        %679 = vperm.xlu0 %678, %v657
        %v680 = vpop.permute.xlu0 %679
        %683 = vset.pattern.permute.xlu0 0
        %684 = vperm.xlu0 %683, %v658
        %v685 = vpop.permute.xlu0 %684
        %688 = vset.pattern.permute.xlu0 0
        %689 = vperm.xlu0 %688, %v659
        %v690 = vpop.permute.xlu0 %689
        %693 = vset.pattern.permute.xlu0 0
        %694 = vperm.xlu0 %693, %v660
        %v695 = vpop.permute.xlu0 %694
        %698 = vset.pattern.permute.xlu0 0
        %699 = vperm.xlu0 %698, %v661
        %v700 = vpop.permute.xlu0 %699
        %v702 = vsub.f32 %v574, %v665
        %v703 = vsub.f32 %v575, %v665
        %v704 = vsub.f32 %v576, %v665
        %v705 = vsub.f32 %v577, %v665
        %v706 = vsub.f32 %v578, %v665
        %v707 = vsub.f32 %v579, %v665
        %v708 = vsub.f32 %v580, %v665
        %v709 = vsub.f32 %v581, %v665
        %v710 = vsub.f32 %v582, %v665
        %v711 = vsub.f32 %v583, %v665
        %v712 = vsub.f32 %v584, %v670
        %v713 = vsub.f32 %v585, %v670
        %v714 = vsub.f32 %v586, %v670
        %v715 = vsub.f32 %v587, %v670
        %v716 = vsub.f32 %v588, %v670
        %v717 = vsub.f32 %v589, %v670
        %v718 = vsub.f32 %v590, %v670
        %v719 = vsub.f32 %v591, %v670
        %v720 = vsub.f32 %v592, %v670
        %v721 = vsub.f32 %v593, %v670
        %v722 = vsub.f32 %v594, %v675
        %v723 = vsub.f32 %v595, %v675
        %v724 = vsub.f32 %v596, %v675
        %v725 = vsub.f32 %v597, %v675
        %v726 = vsub.f32 %v598, %v675
        %v727 = vsub.f32 %v599, %v675
        %v728 = vsub.f32 %v600, %v675
        %v729 = vsub.f32 %v601, %v675
        %v730 = vsub.f32 %v602, %v675
        %v731 = vsub.f32 %v603, %v675
        %v732 = vsub.f32 %v604, %v680
        %v733 = vsub.f32 %v605, %v680
        %v734 = vsub.f32 %v606, %v680
        %v735 = vsub.f32 %v607, %v680
        %v736 = vsub.f32 %v608, %v680
        %v737 = vsub.f32 %v609, %v680
        %v738 = vsub.f32 %v610, %v680
        %v739 = vsub.f32 %v611, %v680
        %v740 = vsub.f32 %v612, %v680
        %v741 = vsub.f32 %v613, %v680
        %v742 = vsub.f32 %v614, %v685
        %v743 = vsub.f32 %v615, %v685
        %v744 = vsub.f32 %v616, %v685
        %v745 = vsub.f32 %v617, %v685
        %v746 = vsub.f32 %v618, %v685
        %v747 = vsub.f32 %v619, %v685
        %v748 = vsub.f32 %v620, %v685
        %v749 = vsub.f32 %v621, %v685
        %v750 = vsub.f32 %v622, %v685
        %v751 = vsub.f32 %v623, %v685
        %v752 = vsub.f32 %v624, %v690
        %v753 = vsub.f32 %v625, %v690
        %v754 = vsub.f32 %v626, %v690
        %v755 = vsub.f32 %v627, %v690
        %v756 = vsub.f32 %v628, %v690
        %v757 = vsub.f32 %v629, %v690
        %v758 = vsub.f32 %v630, %v690
        %v759 = vsub.f32 %v631, %v690
        %v760 = vsub.f32 %v632, %v690
        %v761 = vsub.f32 %v633, %v690
        %v762 = vsub.f32 %v634, %v695
        %v763 = vsub.f32 %v635, %v695
        %v764 = vsub.f32 %v636, %v695
        %v765 = vsub.f32 %v637, %v695
        %v766 = vsub.f32 %v638, %v695
        %v767 = vsub.f32 %v639, %v695
        %v768 = vsub.f32 %v640, %v695
        %v769 = vsub.f32 %v641, %v695
        %v770 = vsub.f32 %v642, %v695
        %v771 = vsub.f32 %v643, %v695
        %v772 = vsub.f32 %v644, %v700
        %v773 = vsub.f32 %v645, %v700
        %v774 = vsub.f32 %v646, %v700
        %v775 = vsub.f32 %v647, %v700
        %v776 = vsub.f32 %v648, %v700
        %v777 = vsub.f32 %v649, %v700
        %v778 = vsub.f32 %v650, %v700
        %v779 = vsub.f32 %v651, %v700
        %v780 = vsub.f32 %v652, %v700
        %v781 = vsub.f32 %v653, %v700
        %v782 = vmax.f32 %v702, 0.0
        %v783 = vmax.f32 %v703, 0.0
        %v784 = vmax.f32 %v704, 0.0
        %v785 = vmax.f32 %v705, 0.0
        %v786 = vmax.f32 %v706, 0.0
        %v787 = vmax.f32 %v707, 0.0
        %v788 = vmax.f32 %v708, 0.0
        %v789 = vmax.f32 %v709, 0.0
        %v790 = vmax.f32 %v710, 0.0
        %v791 = vmax.f32 %v711, 0.0
        %v792 = vmax.f32 %v712, 0.0
        %v793 = vmax.f32 %v713, 0.0
        %v794 = vmax.f32 %v714, 0.0
        %v795 = vmax.f32 %v715, 0.0
        %v796 = vmax.f32 %v716, 0.0
        %v797 = vmax.f32 %v717, 0.0
        %v798 = vmax.f32 %v718, 0.0
        %v799 = vmax.f32 %v719, 0.0
        %v800 = vmax.f32 %v720, 0.0
        %v801 = vmax.f32 %v721, 0.0
        %v802 = vmax.f32 %v722, 0.0
        %v803 = vmax.f32 %v723, 0.0
        %v804 = vmax.f32 %v724, 0.0
        %v805 = vmax.f32 %v725, 0.0
        %v806 = vmax.f32 %v726, 0.0
        %v807 = vmax.f32 %v727, 0.0
        %v808 = vmax.f32 %v728, 0.0
        %v809 = vmax.f32 %v729, 0.0
        %v810 = vmax.f32 %v730, 0.0
        %v811 = vmax.f32 %v731, 0.0
        %v812 = vmax.f32 %v732, 0.0
        %v813 = vmax.f32 %v733, 0.0
        %v814 = vmax.f32 %v734, 0.0
        %v815 = vmax.f32 %v735, 0.0
        %v816 = vmax.f32 %v736, 0.0
        %v817 = vmax.f32 %v737, 0.0
        %v818 = vmax.f32 %v738, 0.0
        %v819 = vmax.f32 %v739, 0.0
        %v820 = vmax.f32 %v740, 0.0
        %v821 = vmax.f32 %v741, 0.0
        %v822 = vmax.f32 %v742, 0.0
        %v823 = vmax.f32 %v743, 0.0
        %v824 = vmax.f32 %v744, 0.0
        %v825 = vmax.f32 %v745, 0.0
        %v826 = vmax.f32 %v746, 0.0
        %v827 = vmax.f32 %v747, 0.0
        %v828 = vmax.f32 %v748, 0.0
        %v829 = vmax.f32 %v749, 0.0
        %v830 = vmax.f32 %v750, 0.0
        %v831 = vmax.f32 %v751, 0.0
        %v832 = vmax.f32 %v752, 0.0
        %v833 = vmax.f32 %v753, 0.0
        %v834 = vmax.f32 %v754, 0.0
        %v835 = vmax.f32 %v755, 0.0
        %v836 = vmax.f32 %v756, 0.0
        %v837 = vmax.f32 %v757, 0.0
        %v838 = vmax.f32 %v758, 0.0
        %v839 = vmax.f32 %v759, 0.0
        %v840 = vmax.f32 %v760, 0.0
        %v841 = vmax.f32 %v761, 0.0
        %v842 = vmax.f32 %v762, 0.0
        %v843 = vmax.f32 %v763, 0.0
        %v844 = vmax.f32 %v764, 0.0
        %v845 = vmax.f32 %v765, 0.0
        %v846 = vmax.f32 %v766, 0.0
        %v847 = vmax.f32 %v767, 0.0
        %v848 = vmax.f32 %v768, 0.0
        %v849 = vmax.f32 %v769, 0.0
        %v850 = vmax.f32 %v770, 0.0
        %v851 = vmax.f32 %v771, 0.0
        %v852 = vmax.f32 %v772, 0.0
        %v853 = vmax.f32 %v773, 0.0
        %v854 = vmax.f32 %v774, 0.0
        %v855 = vmax.f32 %v775, 0.0
        %v856 = vmax.f32 %v776, 0.0
        %v857 = vmax.f32 %v777, 0.0
        %v858 = vmax.f32 %v778, 0.0
        %v859 = vmax.f32 %v779, 0.0
        %v860 = vmax.f32 %v780, 0.0
        %v861 = vmax.f32 %v781, 0.0
        %v862 = vld [vmem:[%s450] sm:$0xff]
        %v863 = vld [vmem:[%s450 + $0x8] sm:$0xff]
        %v864 = vld [vmem:[%s450 + $0x10] sm:$0xff]
        %v865 = vld [vmem:[%s450 + $0x18] sm:$0xff]
        %v866 = vld [vmem:[%s450 + $0x20] sm:$0xff]
        %v867 = vld [vmem:[%s450 + $0x28] sm:$0xff]
        %v868 = vld [vmem:[%s450 + $0x30] sm:$0xff]
        %v869 = vld [vmem:[%s450 + $0x38] sm:$0xff]
        %vm870 = vcmask 523264
        %v872 = vsel %vm870, %v862, 0
        %v875 = vsel %vm870, %v863, 0
        %v878 = vsel %vm870, %v864, 0
        %v881 = vsel %vm870, %v865, 0
        %v884 = vsel %vm870, %v866, 0
        %v887 = vsel %vm870, %v867, 0
        %v890 = vsel %vm870, %v868, 0
        %v893 = vsel %vm870, %v869, 0
        %895 = vmatprep.subr.mxu0 %v783
        %896 = vmatpush1.msra.mxu0 %v782
        %897 = vmatprep.subr.mxu0 %v793
        %898 = vmatpush1.msra.mxu0 %v792
        %899 = vmatprep.subr.mxu0 %v803
        %900 = vmatpush1.msra.mxu0 %v802
        %901 = vmatprep.subr.mxu0 %v813
        %902 = vmatpush1.msra.mxu0 %v812
        %903 = vmatprep.subr.mxu0 %v823
        %904 = vmatpush1.msra.mxu0 %v822
        %905 = vmatprep.subr.mxu0 %v833
        %906 = vmatpush1.msra.mxu0 %v832
        %907 = vmatprep.subr.mxu0 %v843
        %908 = vmatpush1.msra.mxu0 %v842
        %909 = vmatprep.subr.mxu0 %v853
        %910 = vmatpush1.msra.mxu0 %v852
        %911 = vmatprep.subr.mxu0 0.0
        %912 = vmatpush1.msra.mxu0 0.0
        %913 = vmatprep.subr.mxu0 0.0
        %914 = vmatpush1.msra.mxu0 0.0
        %915 = vmatprep.subr.mxu0 0.0
        %916 = vmatpush1.msra.mxu0 0.0
        %917 = vmatprep.subr.mxu0 0.0
        %918 = vmatpush1.msra.mxu0 0.0
        %919 = vmatprep.subr.mxu0 0.0
        %920 = vmatpush1.msra.mxu0 0.0
        %921 = vmatprep.subr.mxu0 0.0
        %922 = vmatpush1.msra.mxu0 0.0
        %923 = vmatprep.subr.mxu0 0.0
        %924 = vmatpush1.msra.mxu0 0.0
        %925 = vmatprep.subr.mxu0 0.0
        %926 = vmatpush1.msra.mxu0 0.0
        %927 = vmatprep.subr.mxu0 0.0
        %928 = vmatpush1.msra.mxu0 0.0
        %929 = vmatprep.subr.mxu0 0.0
        %930 = vmatpush1.msra.mxu0 0.0
        %931 = vmatprep.subr.mxu0 0.0
        %932 = vmatpush1.msra.mxu0 0.0
        %933 = vmatprep.subr.mxu0 0.0
        %934 = vmatpush1.msra.mxu0 0.0
        %935 = vmatprep.subr.mxu0 0.0
        %936 = vmatpush1.msra.mxu0 0.0
        %937 = vmatprep.subr.mxu0 0.0
        %938 = vmatpush1.msra.mxu0 0.0
        %939 = vmatprep.subr.mxu0 0.0
        %940 = vmatpush1.msra.mxu0 0.0
        %941 = vmatprep.subr.mxu0 0.0
        %942 = vmatpush1.msra.mxu0 0.0
        %943 = vmatprep.subr.mxu0 0.0
        %944 = vmatpush1.msra.mxu0 0.0
        %945 = vmatprep.subr.mxu0 0.0
        %946 = vmatpush1.msra.mxu0 0.0
        %947 = vmatprep.subr.mxu0 0.0
        %948 = vmatpush1.msra.mxu0 0.0
        %949 = vmatprep.subr.mxu0 0.0
        %950 = vmatpush1.msra.mxu0 0.0
        %951 = vmatprep.subr.mxu0 0.0
        %952 = vmatpush1.msra.mxu0 0.0
        %953 = vmatprep.subr.mxu0 0.0
        %954 = vmatpush1.msra.mxu0 0.0
        %955 = vmatprep.subr.mxu0 0.0
        %956 = vmatpush1.msra.mxu0 0.0
        %957 = vmatprep.subr.mxu0 0.0
        %958 = vmatpush1.msra.mxu0 0.0
        %959 = vmatprep.mubr.f32.mxu0 0.0
        %960 = vmatmul.mubr.f32.gmra.mrb[0].mxu0 %v872
        %v961 = vpop.f32.mrb[0].mxu0
        %v962 = vadd.f32 0.0, %v961
        %v963 = vpop.f32.mrb[0].mxu0
        %v964 = vadd.f32 0.0, %v963
        %965 = vmatprep.mubr.f32.mxu0 0.0
        %966 = vmatmul.mubr.f32.gmra.mrb[0].mxu0 %v875
        %v967 = vpop.f32.mrb[0].mxu0
        %v968 = vadd.f32 0.0, %v967
        %v969 = vpop.f32.mrb[0].mxu0
        %v970 = vadd.f32 0.0, %v969
        %971 = vmatprep.mubr.f32.mxu0 0.0
        %972 = vmatmul.mubr.f32.gmra.mrb[0].mxu0 %v878
        %v973 = vpop.f32.mrb[0].mxu0
        %v974 = vadd.f32 0.0, %v973
        %v975 = vpop.f32.mrb[0].mxu0
        %v976 = vadd.f32 0.0, %v975
        %977 = vmatprep.mubr.f32.mxu0 0.0
        %978 = vmatmul.mubr.f32.gmra.mrb[0].mxu0 %v881
        %v979 = vpop.f32.mrb[0].mxu0
        %v980 = vadd.f32 0.0, %v979
        %v981 = vpop.f32.mrb[0].mxu0
        %v982 = vadd.f32 0.0, %v981
        %983 = vmatprep.mubr.f32.mxu0 0.0
        %984 = vmatmul.mubr.f32.gmra.mrb[0].mxu0 %v884
        %v985 = vpop.f32.mrb[0].mxu0
        %v986 = vadd.f32 0.0, %v985
        %v987 = vpop.f32.mrb[0].mxu0
        %v988 = vadd.f32 0.0, %v987
        %989 = vmatprep.mubr.f32.mxu0 0.0
        %990 = vmatmul.mubr.f32.gmra.mrb[0].mxu0 %v887
        %v991 = vpop.f32.mrb[0].mxu0
        %v992 = vadd.f32 0.0, %v991
        %v993 = vpop.f32.mrb[0].mxu0
        %v994 = vadd.f32 0.0, %v993
        %995 = vmatprep.mubr.f32.mxu0 0.0
        %996 = vmatmul.mubr.f32.gmra.mrb[0].mxu0 %v890
        %v997 = vpop.f32.mrb[0].mxu0
        %v998 = vadd.f32 0.0, %v997
        %v999 = vpop.f32.mrb[0].mxu0
        %v1000 = vadd.f32 0.0, %v999
        %1001 = vmatprep.mubr.f32.mxu0 0.0
        %1002 = vmatmul.mubr.f32.gmra.mrb[0].mxu0 %v893
        %v1003 = vpop.f32.mrb[0].mxu0
        %v1004 = vadd.f32 0.0, %v1003
        %v1005 = vpop.f32.mrb[0].mxu0
        %v1006 = vadd.f32 0.0, %v1005
        %1007 = vdwg.mxu0
        %1008 = vmatprep.subr.mxu0 %v785
        %1009 = vmatpush1.msra.mxu0 %v784
        %1010 = vmatprep.subr.mxu0 %v795
        %1011 = vmatpush1.msra.mxu0 %v794
        %1012 = vmatprep.subr.mxu0 %v805
        %1013 = vmatpush1.msra.mxu0 %v804
        %1014 = vmatprep.subr.mxu0 %v815
        %1015 = vmatpush1.msra.mxu0 %v814
        %1016 = vmatprep.subr.mxu0 %v825
        %1017 = vmatpush1.msra.mxu0 %v824
        %1018 = vmatprep.subr.mxu0 %v835
        %1019 = vmatpush1.msra.mxu0 %v834
        %1020 = vmatprep.subr.mxu0 %v845
        %1021 = vmatpush1.msra.mxu0 %v844
        %1022 = vmatprep.subr.mxu0 %v855
        %1023 = vmatpush1.msra.mxu0 %v854
        %1024 = vmatprep.subr.mxu0 0.0
        %1025 = vmatpush1.msra.mxu0 0.0
        %1026 = vmatprep.subr.mxu0 0.0
        %1027 = vmatpush1.msra.mxu0 0.0
        %1028 = vmatprep.subr.mxu0 0.0
        %1029 = vmatpush1.msra.mxu0 0.0
        %1030 = vmatprep.subr.mxu0 0.0
        %1031 = vmatpush1.msra.mxu0 0.0
        %1032 = vmatprep.subr.mxu0 0.0
        %1033 = vmatpush1.msra.mxu0 0.0
        %1034 = vmatprep.subr.mxu0 0.0
        %1035 = vmatpush1.msra.mxu0 0.0
        %1036 = vmatprep.subr.mxu0 0.0
        %1037 = vmatpush1.msra.mxu0 0.0
        %1038 = vmatprep.subr.mxu0 0.0
        %1039 = vmatpush1.msra.mxu0 0.0
        %1040 = vmatprep.subr.mxu0 0.0
        %1041 = vmatpush1.msra.mxu0 0.0
        %1042 = vmatprep.subr.mxu0 0.0
        %1043 = vmatpush1.msra.mxu0 0.0
        %1044 = vmatprep.subr.mxu0 0.0
        %1045 = vmatpush1.msra.mxu0 0.0
        %1046 = vmatprep.subr.mxu0 0.0
        %1047 = vmatpush1.msra.mxu0 0.0
        %1048 = vmatprep.subr.mxu0 0.0
        %1049 = vmatpush1.msra.mxu0 0.0
        %1050 = vmatprep.subr.mxu0 0.0
        %1051 = vmatpush1.msra.mxu0 0.0
        %1052 = vmatprep.subr.mxu0 0.0
        %1053 = vmatpush1.msra.mxu0 0.0
        %1054 = vmatprep.subr.mxu0 0.0
        %1055 = vmatpush1.msra.mxu0 0.0
        %1056 = vmatprep.subr.mxu0 0.0
        %1057 = vmatpush1.msra.mxu0 0.0
        %1058 = vmatprep.subr.mxu0 0.0
        %1059 = vmatpush1.msra.mxu0 0.0
        %1060 = vmatprep.subr.mxu0 0.0
        %1061 = vmatpush1.msra.mxu0 0.0
        %1062 = vmatprep.subr.mxu0 0.0
        %1063 = vmatpush1.msra.mxu0 0.0
        %1064 = vmatprep.subr.mxu0 0.0
        %1065 = vmatpush1.msra.mxu0 0.0
        %1066 = vmatprep.subr.mxu0 0.0
        %1067 = vmatpush1.msra.mxu0 0.0
        %1068 = vmatprep.subr.mxu0 0.0
        %1069 = vmatpush1.msra.mxu0 0.0
        %1070 = vmatprep.subr.mxu0 0.0
        %1071 = vmatpush1.msra.mxu0 0.0
        %1072 = vmatprep.mubr.f32.mxu0 0.0
        %1073 = vmatmul.mubr.f32.gmra.mrb[0].mxu0 %v872
        %v1074 = vpop.f32.mrb[0].mxu0
        %v1075 = vadd.f32 0.0, %v1074
        %v1076 = vpop.f32.mrb[0].mxu0
        %v1077 = vadd.f32 0.0, %v1076
        %1078 = vmatprep.mubr.f32.mxu0 0.0
        %1079 = vmatmul.mubr.f32.gmra.mrb[0].mxu0 %v875
        %v1080 = vpop.f32.mrb[0].mxu0
        %v1081 = vadd.f32 0.0, %v1080
        %v1082 = vpop.f32.mrb[0].mxu0
        %v1083 = vadd.f32 0.0, %v1082
        %1084 = vmatprep.mubr.f32.mxu0 0.0
        %1085 = vmatmul.mubr.f32.gmra.mrb[0].mxu0 %v878
        %v1086 = vpop.f32.mrb[0].mxu0
        %v1087 = vadd.f32 0.0, %v1086
        %v1088 = vpop.f32.mrb[0].mxu0
        %v1089 = vadd.f32 0.0, %v1088
        %1090 = vmatprep.mubr.f32.mxu0 0.0
        %1091 = vmatmul.mubr.f32.gmra.mrb[0].mxu0 %v881
        %v1092 = vpop.f32.mrb[0].mxu0
        %v1093 = vadd.f32 0.0, %v1092
        %v1094 = vpop.f32.mrb[0].mxu0
        %v1095 = vadd.f32 0.0, %v1094
        %1096 = vmatprep.mubr.f32.mxu0 0.0
        %1097 = vmatmul.mubr.f32.gmra.mrb[0].mxu0 %v884
        %v1098 = vpop.f32.mrb[0].mxu0
        %v1099 = vadd.f32 0.0, %v1098
        %v1100 = vpop.f32.mrb[0].mxu0
        %v1101 = vadd.f32 0.0, %v1100
        %1102 = vmatprep.mubr.f32.mxu0 0.0
        %1103 = vmatmul.mubr.f32.gmra.mrb[0].mxu0 %v887
        %v1104 = vpop.f32.mrb[0].mxu0
        %v1105 = vadd.f32 0.0, %v1104
        %v1106 = vpop.f32.mrb[0].mxu0
        %v1107 = vadd.f32 0.0, %v1106
        %1108 = vmatprep.mubr.f32.mxu0 0.0
        %1109 = vmatmul.mubr.f32.gmra.mrb[0].mxu0 %v890
        %v1110 = vpop.f32.mrb[0].mxu0
        %v1111 = vadd.f32 0.0, %v1110
        %v1112 = vpop.f32.mrb[0].mxu0
        %v1113 = vadd.f32 0.0, %v1112
        %1114 = vmatprep.mubr.f32.mxu0 0.0
        %1115 = vmatmul.mubr.f32.gmra.mrb[0].mxu0 %v893
        %v1116 = vpop.f32.mrb[0].mxu0
        %v1117 = vadd.f32 0.0, %v1116
        %v1118 = vpop.f32.mrb[0].mxu0
        %v1119 = vadd.f32 0.0, %v1118
        %1120 = vdwg.mxu0
        %1121 = vmatprep.subr.mxu0 %v787
        %1122 = vmatpush1.msra.mxu0 %v786
        %1123 = vmatprep.subr.mxu0 %v797
        %1124 = vmatpush1.msra.mxu0 %v796
        %1125 = vmatprep.subr.mxu0 %v807
        %1126 = vmatpush1.msra.mxu0 %v806
        %1127 = vmatprep.subr.mxu0 %v817
        %1128 = vmatpush1.msra.mxu0 %v816
        %1129 = vmatprep.subr.mxu0 %v827
        %1130 = vmatpush1.msra.mxu0 %v826
        %1131 = vmatprep.subr.mxu0 %v837
        %1132 = vmatpush1.msra.mxu0 %v836
        %1133 = vmatprep.subr.mxu0 %v847
        %1134 = vmatpush1.msra.mxu0 %v846
        %1135 = vmatprep.subr.mxu0 %v857
        %1136 = vmatpush1.msra.mxu0 %v856
        %1137 = vmatprep.subr.mxu0 0.0
        %1138 = vmatpush1.msra.mxu0 0.0
        %1139 = vmatprep.subr.mxu0 0.0
        %1140 = vmatpush1.msra.mxu0 0.0
        %1141 = vmatprep.subr.mxu0 0.0
        %1142 = vmatpush1.msra.mxu0 0.0
        %1143 = vmatprep.subr.mxu0 0.0
        %1144 = vmatpush1.msra.mxu0 0.0
        %1145 = vmatprep.subr.mxu0 0.0
        %1146 = vmatpush1.msra.mxu0 0.0
        %1147 = vmatprep.subr.mxu0 0.0
        %1148 = vmatpush1.msra.mxu0 0.0
        %1149 = vmatprep.subr.mxu0 0.0
        %1150 = vmatpush1.msra.mxu0 0.0
        %1151 = vmatprep.subr.mxu0 0.0
        %1152 = vmatpush1.msra.mxu0 0.0
        %1153 = vmatprep.subr.mxu0 0.0
        %1154 = vmatpush1.msra.mxu0 0.0
        %1155 = vmatprep.subr.mxu0 0.0
        %1156 = vmatpush1.msra.mxu0 0.0
        %1157 = vmatprep.subr.mxu0 0.0
        %1158 = vmatpush1.msra.mxu0 0.0
        %1159 = vmatprep.subr.mxu0 0.0
        %1160 = vmatpush1.msra.mxu0 0.0
        %1161 = vmatprep.subr.mxu0 0.0
        %1162 = vmatpush1.msra.mxu0 0.0
        %1163 = vmatprep.subr.mxu0 0.0
        %1164 = vmatpush1.msra.mxu0 0.0
        %1165 = vmatprep.subr.mxu0 0.0
        %1166 = vmatpush1.msra.mxu0 0.0
        %1167 = vmatprep.subr.mxu0 0.0
        %1168 = vmatpush1.msra.mxu0 0.0
        %1169 = vmatprep.subr.mxu0 0.0
        %1170 = vmatpush1.msra.mxu0 0.0
        %1171 = vmatprep.subr.mxu0 0.0
        %1172 = vmatpush1.msra.mxu0 0.0
        %1173 = vmatprep.subr.mxu0 0.0
        %1174 = vmatpush1.msra.mxu0 0.0
        %1175 = vmatprep.subr.mxu0 0.0
        %1176 = vmatpush1.msra.mxu0 0.0
        %1177 = vmatprep.subr.mxu0 0.0
        %1178 = vmatpush1.msra.mxu0 0.0
        %1179 = vmatprep.subr.mxu0 0.0
        %1180 = vmatpush1.msra.mxu0 0.0
        %1181 = vmatprep.subr.mxu0 0.0
        %1182 = vmatpush1.msra.mxu0 0.0
        %1183 = vmatprep.subr.mxu0 0.0
        %1184 = vmatpush1.msra.mxu0 0.0
        %1185 = vmatprep.mubr.f32.mxu0 0.0
        %1186 = vmatmul.mubr.f32.gmra.mrb[0].mxu0 %v872
        %v1187 = vpop.f32.mrb[0].mxu0
        %v1188 = vadd.f32 0.0, %v1187
        %v1189 = vpop.f32.mrb[0].mxu0
        %v1190 = vadd.f32 0.0, %v1189
        %1191 = vmatprep.mubr.f32.mxu0 0.0
        %1192 = vmatmul.mubr.f32.gmra.mrb[0].mxu0 %v875
        %v1193 = vpop.f32.mrb[0].mxu0
        %v1194 = vadd.f32 0.0, %v1193
        %v1195 = vpop.f32.mrb[0].mxu0
        %v1196 = vadd.f32 0.0, %v1195
        %1197 = vmatprep.mubr.f32.mxu0 0.0
        %1198 = vmatmul.mubr.f32.gmra.mrb[0].mxu0 %v878
        %v1199 = vpop.f32.mrb[0].mxu0
        %v1200 = vadd.f32 0.0, %v1199
        %v1201 = vpop.f32.mrb[0].mxu0
        %v1202 = vadd.f32 0.0, %v1201
        %1203 = vmatprep.mubr.f32.mxu0 0.0
        %1204 = vmatmul.mubr.f32.gmra.mrb[0].mxu0 %v881
        %v1205 = vpop.f32.mrb[0].mxu0
        %v1206 = vadd.f32 0.0, %v1205
        %v1207 = vpop.f32.mrb[0].mxu0
        %v1208 = vadd.f32 0.0, %v1207
        %1209 = vmatprep.mubr.f32.mxu0 0.0
        %1210 = vmatmul.mubr.f32.gmra.mrb[0].mxu0 %v884
        %v1211 = vpop.f32.mrb[0].mxu0
        %v1212 = vadd.f32 0.0, %v1211
        %v1213 = vpop.f32.mrb[0].mxu0
        %v1214 = vadd.f32 0.0, %v1213
        %1215 = vmatprep.mubr.f32.mxu0 0.0
        %1216 = vmatmul.mubr.f32.gmra.mrb[0].mxu0 %v887
        %v1217 = vpop.f32.mrb[0].mxu0
        %v1218 = vadd.f32 0.0, %v1217
        %v1219 = vpop.f32.mrb[0].mxu0
        %v1220 = vadd.f32 0.0, %v1219
        %1221 = vmatprep.mubr.f32.mxu0 0.0
        %1222 = vmatmul.mubr.f32.gmra.mrb[0].mxu0 %v890
        %v1223 = vpop.f32.mrb[0].mxu0
        %v1224 = vadd.f32 0.0, %v1223
        %v1225 = vpop.f32.mrb[0].mxu0
        %v1226 = vadd.f32 0.0, %v1225
        %1227 = vmatprep.mubr.f32.mxu0 0.0
        %1228 = vmatmul.mubr.f32.gmra.mrb[0].mxu0 %v893
        %v1229 = vpop.f32.mrb[0].mxu0
        %v1230 = vadd.f32 0.0, %v1229
        %v1231 = vpop.f32.mrb[0].mxu0
        %v1232 = vadd.f32 0.0, %v1231
        %1233 = vdwg.mxu0
        %1234 = vmatprep.subr.mxu0 %v789
        %1235 = vmatpush1.msra.mxu0 %v788
        %1236 = vmatprep.subr.mxu0 %v799
        %1237 = vmatpush1.msra.mxu0 %v798
        %1238 = vmatprep.subr.mxu0 %v809
        %1239 = vmatpush1.msra.mxu0 %v808
        %1240 = vmatprep.subr.mxu0 %v819
        %1241 = vmatpush1.msra.mxu0 %v818
        %1242 = vmatprep.subr.mxu0 %v829
        %1243 = vmatpush1.msra.mxu0 %v828
        %1244 = vmatprep.subr.mxu0 %v839
        %1245 = vmatpush1.msra.mxu0 %v838
        %1246 = vmatprep.subr.mxu0 %v849
        %1247 = vmatpush1.msra.mxu0 %v848
        %1248 = vmatprep.subr.mxu0 %v859
        %1249 = vmatpush1.msra.mxu0 %v858
        %1250 = vmatprep.subr.mxu0 0.0
        %1251 = vmatpush1.msra.mxu0 0.0
        %1252 = vmatprep.subr.mxu0 0.0
        %1253 = vmatpush1.msra.mxu0 0.0
        %1254 = vmatprep.subr.mxu0 0.0
        %1255 = vmatpush1.msra.mxu0 0.0
        %1256 = vmatprep.subr.mxu0 0.0
        %1257 = vmatpush1.msra.mxu0 0.0
        %1258 = vmatprep.subr.mxu0 0.0
        %1259 = vmatpush1.msra.mxu0 0.0
        %1260 = vmatprep.subr.mxu0 0.0
        %1261 = vmatpush1.msra.mxu0 0.0
        %1262 = vmatprep.subr.mxu0 0.0
        %1263 = vmatpush1.msra.mxu0 0.0
        %1264 = vmatprep.subr.mxu0 0.0
        %1265 = vmatpush1.msra.mxu0 0.0
        %1266 = vmatprep.subr.mxu0 0.0
        %1267 = vmatpush1.msra.mxu0 0.0
        %1268 = vmatprep.subr.mxu0 0.0
        %1269 = vmatpush1.msra.mxu0 0.0
        %1270 = vmatprep.subr.mxu0 0.0
        %1271 = vmatpush1.msra.mxu0 0.0
        %1272 = vmatprep.subr.mxu0 0.0
        %1273 = vmatpush1.msra.mxu0 0.0
        %1274 = vmatprep.subr.mxu0 0.0
        %1275 = vmatpush1.msra.mxu0 0.0
        %1276 = vmatprep.subr.mxu0 0.0
        %1277 = vmatpush1.msra.mxu0 0.0
        %1278 = vmatprep.subr.mxu0 0.0
        %1279 = vmatpush1.msra.mxu0 0.0
        %1280 = vmatprep.subr.mxu0 0.0
        %1281 = vmatpush1.msra.mxu0 0.0
        %1282 = vmatprep.subr.mxu0 0.0
        %1283 = vmatpush1.msra.mxu0 0.0
        %1284 = vmatprep.subr.mxu0 0.0
        %1285 = vmatpush1.msra.mxu0 0.0
        %1286 = vmatprep.subr.mxu0 0.0
        %1287 = vmatpush1.msra.mxu0 0.0
        %1288 = vmatprep.subr.mxu0 0.0
        %1289 = vmatpush1.msra.mxu0 0.0
        %1290 = vmatprep.subr.mxu0 0.0
        %1291 = vmatpush1.msra.mxu0 0.0
        %1292 = vmatprep.subr.mxu0 0.0
        %1293 = vmatpush1.msra.mxu0 0.0
        %1294 = vmatprep.subr.mxu0 0.0
        %1295 = vmatpush1.msra.mxu0 0.0
        %1296 = vmatprep.subr.mxu0 0.0
        %1297 = vmatpush1.msra.mxu0 0.0
        %1298 = vmatprep.mubr.f32.mxu0 0.0
        %1299 = vmatmul.mubr.f32.gmra.mrb[0].mxu0 %v872
        %v1300 = vpop.f32.mrb[0].mxu0
        %v1301 = vadd.f32 0.0, %v1300
        %v1302 = vpop.f32.mrb[0].mxu0
        %v1303 = vadd.f32 0.0, %v1302
        %1304 = vmatprep.mubr.f32.mxu0 0.0
        %1305 = vmatmul.mubr.f32.gmra.mrb[0].mxu0 %v875
        %v1306 = vpop.f32.mrb[0].mxu0
        %v1307 = vadd.f32 0.0, %v1306
        %v1308 = vpop.f32.mrb[0].mxu0
        %v1309 = vadd.f32 0.0, %v1308
        %1310 = vmatprep.mubr.f32.mxu0 0.0
        %1311 = vmatmul.mubr.f32.gmra.mrb[0].mxu0 %v878
        %v1312 = vpop.f32.mrb[0].mxu0
        %v1313 = vadd.f32 0.0, %v1312
        %v1314 = vpop.f32.mrb[0].mxu0
        %v1315 = vadd.f32 0.0, %v1314
        %1316 = vmatprep.mubr.f32.mxu0 0.0
        %1317 = vmatmul.mubr.f32.gmra.mrb[0].mxu0 %v881
        %v1318 = vpop.f32.mrb[0].mxu0
        %v1319 = vadd.f32 0.0, %v1318
        %v1320 = vpop.f32.mrb[0].mxu0
        %v1321 = vadd.f32 0.0, %v1320
        %1322 = vmatprep.mubr.f32.mxu0 0.0
        %1323 = vmatmul.mubr.f32.gmra.mrb[0].mxu0 %v884
        %v1324 = vpop.f32.mrb[0].mxu0
        %v1325 = vadd.f32 0.0, %v1324
        %v1326 = vpop.f32.mrb[0].mxu0
        %v1327 = vadd.f32 0.0, %v1326
        %1328 = vmatprep.mubr.f32.mxu0 0.0
        %1329 = vmatmul.mubr.f32.gmra.mrb[0].mxu0 %v887
        %v1330 = vpop.f32.mrb[0].mxu0
        %v1331 = vadd.f32 0.0, %v1330
        %v1332 = vpop.f32.mrb[0].mxu0
        %v1333 = vadd.f32 0.0, %v1332
        %1334 = vmatprep.mubr.f32.mxu0 0.0
        %1335 = vmatmul.mubr.f32.gmra.mrb[0].mxu0 %v890
        %v1336 = vpop.f32.mrb[0].mxu0
        %v1337 = vadd.f32 0.0, %v1336
        %v1338 = vpop.f32.mrb[0].mxu0
        %v1339 = vadd.f32 0.0, %v1338
        %1340 = vmatprep.mubr.f32.mxu0 0.0
        %1341 = vmatmul.mubr.f32.gmra.mrb[0].mxu0 %v893
        %v1342 = vpop.f32.mrb[0].mxu0
        %v1343 = vadd.f32 0.0, %v1342
        %v1344 = vpop.f32.mrb[0].mxu0
        %v1345 = vadd.f32 0.0, %v1344
        %1346 = vdwg.mxu0
        %1347 = vmatprep.subr.mxu0 %v791
        %1348 = vmatpush1.msra.mxu0 %v790
        %1349 = vmatprep.subr.mxu0 %v801
        %1350 = vmatpush1.msra.mxu0 %v800
        %1351 = vmatprep.subr.mxu0 %v811
        %1352 = vmatpush1.msra.mxu0 %v810
        %1353 = vmatprep.subr.mxu0 %v821
        %1354 = vmatpush1.msra.mxu0 %v820
        %1355 = vmatprep.subr.mxu0 %v831
        %1356 = vmatpush1.msra.mxu0 %v830
        %1357 = vmatprep.subr.mxu0 %v841
        %1358 = vmatpush1.msra.mxu0 %v840
        %1359 = vmatprep.subr.mxu0 %v851
        %1360 = vmatpush1.msra.mxu0 %v850
        %1361 = vmatprep.subr.mxu0 %v861
        %1362 = vmatpush1.msra.mxu0 %v860
        %1363 = vmatprep.subr.mxu0 0.0
        %1364 = vmatpush1.msra.mxu0 0.0
        %1365 = vmatprep.subr.mxu0 0.0
        %1366 = vmatpush1.msra.mxu0 0.0
        %1367 = vmatprep.subr.mxu0 0.0
        %1368 = vmatpush1.msra.mxu0 0.0
        %1369 = vmatprep.subr.mxu0 0.0
        %1370 = vmatpush1.msra.mxu0 0.0
        %1371 = vmatprep.subr.mxu0 0.0
        %1372 = vmatpush1.msra.mxu0 0.0
        %1373 = vmatprep.subr.mxu0 0.0
        %1374 = vmatpush1.msra.mxu0 0.0
        %1375 = vmatprep.subr.mxu0 0.0
        %1376 = vmatpush1.msra.mxu0 0.0
        %1377 = vmatprep.subr.mxu0 0.0
        %1378 = vmatpush1.msra.mxu0 0.0
        %1379 = vmatprep.subr.mxu0 0.0
        %1380 = vmatpush1.msra.mxu0 0.0
        %1381 = vmatprep.subr.mxu0 0.0
        %1382 = vmatpush1.msra.mxu0 0.0
        %1383 = vmatprep.subr.mxu0 0.0
        %1384 = vmatpush1.msra.mxu0 0.0
        %1385 = vmatprep.subr.mxu0 0.0
        %1386 = vmatpush1.msra.mxu0 0.0
        %1387 = vmatprep.subr.mxu0 0.0
        %1388 = vmatpush1.msra.mxu0 0.0
        %1389 = vmatprep.subr.mxu0 0.0
        %1390 = vmatpush1.msra.mxu0 0.0
        %1391 = vmatprep.subr.mxu0 0.0
        %1392 = vmatpush1.msra.mxu0 0.0
        %1393 = vmatprep.subr.mxu0 0.0
        %1394 = vmatpush1.msra.mxu0 0.0
        %1395 = vmatprep.subr.mxu0 0.0
        %1396 = vmatpush1.msra.mxu0 0.0
        %1397 = vmatprep.subr.mxu0 0.0
        %1398 = vmatpush1.msra.mxu0 0.0
        %1399 = vmatprep.subr.mxu0 0.0
        %1400 = vmatpush1.msra.mxu0 0.0
        %1401 = vmatprep.subr.mxu0 0.0
        %1402 = vmatpush1.msra.mxu0 0.0
        %1403 = vmatprep.subr.mxu0 0.0
        %1404 = vmatpush1.msra.mxu0 0.0
        %1405 = vmatprep.subr.mxu0 0.0
        %1406 = vmatpush1.msra.mxu0 0.0
        %1407 = vmatprep.subr.mxu0 0.0
        %1408 = vmatpush1.msra.mxu0 0.0
        %1409 = vmatprep.subr.mxu0 0.0
        %1410 = vmatpush1.msra.mxu0 0.0
        %1411 = vmatprep.mubr.f32.mxu0 0.0
        %1412 = vmatmul.mubr.f32.gmra.mrb[0].mxu0 %v872
        %v1413 = vpop.f32.mrb[0].mxu0
        %v1414 = vadd.f32 0.0, %v1413
        %v1415 = vpop.f32.mrb[0].mxu0
        %v1416 = vadd.f32 0.0, %v1415
        %1417 = vmatprep.mubr.f32.mxu0 0.0
        %1418 = vmatmul.mubr.f32.gmra.mrb[0].mxu0 %v875
        %v1419 = vpop.f32.mrb[0].mxu0
        %v1420 = vadd.f32 0.0, %v1419
        %v1421 = vpop.f32.mrb[0].mxu0
        %v1422 = vadd.f32 0.0, %v1421
        %1423 = vmatprep.mubr.f32.mxu0 0.0
        %1424 = vmatmul.mubr.f32.gmra.mrb[0].mxu0 %v878
        %v1425 = vpop.f32.mrb[0].mxu0
        %v1426 = vadd.f32 0.0, %v1425
        %v1427 = vpop.f32.mrb[0].mxu0
        %v1428 = vadd.f32 0.0, %v1427
        %1429 = vmatprep.mubr.f32.mxu0 0.0
        %1430 = vmatmul.mubr.f32.gmra.mrb[0].mxu0 %v881
        %v1431 = vpop.f32.mrb[0].mxu0
        %v1432 = vadd.f32 0.0, %v1431
        %v1433 = vpop.f32.mrb[0].mxu0
        %v1434 = vadd.f32 0.0, %v1433
        %1435 = vmatprep.mubr.f32.mxu0 0.0
        %1436 = vmatmul.mubr.f32.gmra.mrb[0].mxu0 %v884
        %v1437 = vpop.f32.mrb[0].mxu0
        %v1438 = vadd.f32 0.0, %v1437
        %v1439 = vpop.f32.mrb[0].mxu0
        %v1440 = vadd.f32 0.0, %v1439
        %1441 = vmatprep.mubr.f32.mxu0 0.0
        %1442 = vmatmul.mubr.f32.gmra.mrb[0].mxu0 %v887
        %v1443 = vpop.f32.mrb[0].mxu0
        %v1444 = vadd.f32 0.0, %v1443
        %v1445 = vpop.f32.mrb[0].mxu0
        %v1446 = vadd.f32 0.0, %v1445
        %1447 = vmatprep.mubr.f32.mxu0 0.0
        %1448 = vmatmul.mubr.f32.gmra.mrb[0].mxu0 %v890
        %v1449 = vpop.f32.mrb[0].mxu0
        %v1450 = vadd.f32 0.0, %v1449
        %v1451 = vpop.f32.mrb[0].mxu0
        %v1452 = vadd.f32 0.0, %v1451
        %1453 = vmatprep.mubr.f32.mxu0 0.0
        %1454 = vmatmul.mubr.f32.gmra.mrb[0].mxu0 %v893
        %v1455 = vpop.f32.mrb[0].mxu0
        %v1456 = vadd.f32 0.0, %v1455
        %v1457 = vpop.f32.mrb[0].mxu0
        %v1458 = vadd.f32 0.0, %v1457
        %1459 = vdwg.mxu0
        %v1460 = vld [vmem:[%s455] sm:$0xff]
        %v1461 = vld [vmem:[%s455 + $0x8] sm:$0xff]
        %v1462 = vld [vmem:[%s455 + $0x10] sm:$0xff]
        %v1463 = vld [vmem:[%s455 + $0x18] sm:$0xff]
        %v1464 = vld [vmem:[%s455 + $0x20] sm:$0xff]
        %v1465 = vld [vmem:[%s455 + $0x28] sm:$0xff]
        %v1466 = vld [vmem:[%s455 + $0x30] sm:$0xff]
        %v1467 = vld [vmem:[%s455 + $0x38] sm:$0xff]
        %1469 = vset.pattern.permute.xlu0 0
        %1470 = vperm.xlu0 %1469, %v1460
        %v1471 = vpop.permute.xlu0 %1470
        %1474 = vset.pattern.permute.xlu0 0
        %1475 = vperm.xlu0 %1474, %v1461
        %v1476 = vpop.permute.xlu0 %1475
        %1479 = vset.pattern.permute.xlu0 0
        %1480 = vperm.xlu0 %1479, %v1462
        %v1481 = vpop.permute.xlu0 %1480
        %1484 = vset.pattern.permute.xlu0 0
        %1485 = vperm.xlu0 %1484, %v1463
        %v1486 = vpop.permute.xlu0 %1485
        %1489 = vset.pattern.permute.xlu0 0
        %1490 = vperm.xlu0 %1489, %v1464
        %v1491 = vpop.permute.xlu0 %1490
        %1494 = vset.pattern.permute.xlu0 0
        %1495 = vperm.xlu0 %1494, %v1465
        %v1496 = vpop.permute.xlu0 %1495
        %1499 = vset.pattern.permute.xlu0 0
        %1500 = vperm.xlu0 %1499, %v1466
        %v1501 = vpop.permute.xlu0 %1500
        %1504 = vset.pattern.permute.xlu0 0
        %1505 = vperm.xlu0 %1504, %v1467
        %v1506 = vpop.permute.xlu0 %1505
        %v1508 = vsub.f32 %v962, %v1471
        %v1509 = vsub.f32 %v964, %v1471
        %v1510 = vsub.f32 %v1075, %v1471
        %v1511 = vsub.f32 %v1077, %v1471
        %v1512 = vsub.f32 %v1188, %v1471
        %v1513 = vsub.f32 %v1190, %v1471
        %v1514 = vsub.f32 %v1301, %v1471
        %v1515 = vsub.f32 %v1303, %v1471
        %v1516 = vsub.f32 %v1414, %v1471
        %v1517 = vsub.f32 %v1416, %v1471
        %v1518 = vsub.f32 %v968, %v1476
        %v1519 = vsub.f32 %v970, %v1476
        %v1520 = vsub.f32 %v1081, %v1476
        %v1521 = vsub.f32 %v1083, %v1476
        %v1522 = vsub.f32 %v1194, %v1476
        %v1523 = vsub.f32 %v1196, %v1476
        %v1524 = vsub.f32 %v1307, %v1476
        %v1525 = vsub.f32 %v1309, %v1476
        %v1526 = vsub.f32 %v1420, %v1476
        %v1527 = vsub.f32 %v1422, %v1476
        %v1528 = vsub.f32 %v974, %v1481
        %v1529 = vsub.f32 %v976, %v1481
        %v1530 = vsub.f32 %v1087, %v1481
        %v1531 = vsub.f32 %v1089, %v1481
        %v1532 = vsub.f32 %v1200, %v1481
        %v1533 = vsub.f32 %v1202, %v1481
        %v1534 = vsub.f32 %v1313, %v1481
        %v1535 = vsub.f32 %v1315, %v1481
        %v1536 = vsub.f32 %v1426, %v1481
        %v1537 = vsub.f32 %v1428, %v1481
        %v1538 = vsub.f32 %v980, %v1486
        %v1539 = vsub.f32 %v982, %v1486
        %v1540 = vsub.f32 %v1093, %v1486
        %v1541 = vsub.f32 %v1095, %v1486
        %v1542 = vsub.f32 %v1206, %v1486
        %v1543 = vsub.f32 %v1208, %v1486
        %v1544 = vsub.f32 %v1319, %v1486
        %v1545 = vsub.f32 %v1321, %v1486
        %v1546 = vsub.f32 %v1432, %v1486
        %v1547 = vsub.f32 %v1434, %v1486
        %v1548 = vsub.f32 %v986, %v1491
        %v1549 = vsub.f32 %v988, %v1491
        %v1550 = vsub.f32 %v1099, %v1491
        %v1551 = vsub.f32 %v1101, %v1491
        %v1552 = vsub.f32 %v1212, %v1491
        %v1553 = vsub.f32 %v1214, %v1491
        %v1554 = vsub.f32 %v1325, %v1491
        %v1555 = vsub.f32 %v1327, %v1491
        %v1556 = vsub.f32 %v1438, %v1491
        %v1557 = vsub.f32 %v1440, %v1491
        %v1558 = vsub.f32 %v992, %v1496
        %v1559 = vsub.f32 %v994, %v1496
        %v1560 = vsub.f32 %v1105, %v1496
        %v1561 = vsub.f32 %v1107, %v1496
        %v1562 = vsub.f32 %v1218, %v1496
        %v1563 = vsub.f32 %v1220, %v1496
        %v1564 = vsub.f32 %v1331, %v1496
        %v1565 = vsub.f32 %v1333, %v1496
        %v1566 = vsub.f32 %v1444, %v1496
        %v1567 = vsub.f32 %v1446, %v1496
        %v1568 = vsub.f32 %v998, %v1501
        %v1569 = vsub.f32 %v1000, %v1501
        %v1570 = vsub.f32 %v1111, %v1501
        %v1571 = vsub.f32 %v1113, %v1501
        %v1572 = vsub.f32 %v1224, %v1501
        %v1573 = vsub.f32 %v1226, %v1501
        %v1574 = vsub.f32 %v1337, %v1501
        %v1575 = vsub.f32 %v1339, %v1501
        %v1576 = vsub.f32 %v1450, %v1501
        %v1577 = vsub.f32 %v1452, %v1501
        %v1578 = vsub.f32 %v1004, %v1506
        %v1579 = vsub.f32 %v1006, %v1506
        %v1580 = vsub.f32 %v1117, %v1506
        %v1581 = vsub.f32 %v1119, %v1506
        %v1582 = vsub.f32 %v1230, %v1506
        %v1583 = vsub.f32 %v1232, %v1506
        %v1584 = vsub.f32 %v1343, %v1506
        %v1585 = vsub.f32 %v1345, %v1506
        %v1586 = vsub.f32 %v1456, %v1506
        %v1587 = vsub.f32 %v1458, %v1506
        %v1588 = vmax.f32 %v1508, 0.0
        %v1589 = vmax.f32 %v1509, 0.0
        %v1590 = vmax.f32 %v1510, 0.0
        %v1591 = vmax.f32 %v1511, 0.0
        %v1592 = vmax.f32 %v1512, 0.0
        %v1593 = vmax.f32 %v1513, 0.0
        %v1594 = vmax.f32 %v1514, 0.0
        %v1595 = vmax.f32 %v1515, 0.0
        %v1596 = vmax.f32 %v1516, 0.0
        %v1597 = vmax.f32 %v1517, 0.0
        %v1598 = vmax.f32 %v1518, 0.0
        %v1599 = vmax.f32 %v1519, 0.0
        %v1600 = vmax.f32 %v1520, 0.0
        %v1601 = vmax.f32 %v1521, 0.0
        %v1602 = vmax.f32 %v1522, 0.0
        %v1603 = vmax.f32 %v1523, 0.0
        %v1604 = vmax.f32 %v1524, 0.0
        %v1605 = vmax.f32 %v1525, 0.0
        %v1606 = vmax.f32 %v1526, 0.0
        %v1607 = vmax.f32 %v1527, 0.0
        %v1608 = vmax.f32 %v1528, 0.0
        %v1609 = vmax.f32 %v1529, 0.0
        %v1610 = vmax.f32 %v1530, 0.0
        %v1611 = vmax.f32 %v1531, 0.0
        %v1612 = vmax.f32 %v1532, 0.0
        %v1613 = vmax.f32 %v1533, 0.0
        %v1614 = vmax.f32 %v1534, 0.0
        %v1615 = vmax.f32 %v1535, 0.0
        %v1616 = vmax.f32 %v1536, 0.0
        %v1617 = vmax.f32 %v1537, 0.0
        %v1618 = vmax.f32 %v1538, 0.0
        %v1619 = vmax.f32 %v1539, 0.0
        %v1620 = vmax.f32 %v1540, 0.0
        %v1621 = vmax.f32 %v1541, 0.0
        %v1622 = vmax.f32 %v1542, 0.0
        %v1623 = vmax.f32 %v1543, 0.0
        %v1624 = vmax.f32 %v1544, 0.0
        %v1625 = vmax.f32 %v1545, 0.0
        %v1626 = vmax.f32 %v1546, 0.0
        %v1627 = vmax.f32 %v1547, 0.0
        %v1628 = vmax.f32 %v1548, 0.0
        %v1629 = vmax.f32 %v1549, 0.0
        %v1630 = vmax.f32 %v1550, 0.0
        %v1631 = vmax.f32 %v1551, 0.0
        %v1632 = vmax.f32 %v1552, 0.0
        %v1633 = vmax.f32 %v1553, 0.0
        %v1634 = vmax.f32 %v1554, 0.0
        %v1635 = vmax.f32 %v1555, 0.0
        %v1636 = vmax.f32 %v1556, 0.0
        %v1637 = vmax.f32 %v1557, 0.0
        %v1638 = vmax.f32 %v1558, 0.0
        %v1639 = vmax.f32 %v1559, 0.0
        %v1640 = vmax.f32 %v1560, 0.0
        %v1641 = vmax.f32 %v1561, 0.0
        %v1642 = vmax.f32 %v1562, 0.0
        %v1643 = vmax.f32 %v1563, 0.0
        %v1644 = vmax.f32 %v1564, 0.0
        %v1645 = vmax.f32 %v1565, 0.0
        %v1646 = vmax.f32 %v1566, 0.0
        %v1647 = vmax.f32 %v1567, 0.0
        %v1648 = vmax.f32 %v1568, 0.0
        %v1649 = vmax.f32 %v1569, 0.0
        %v1650 = vmax.f32 %v1570, 0.0
        %v1651 = vmax.f32 %v1571, 0.0
        %v1652 = vmax.f32 %v1572, 0.0
        %v1653 = vmax.f32 %v1573, 0.0
        %v1654 = vmax.f32 %v1574, 0.0
        %v1655 = vmax.f32 %v1575, 0.0
        %v1656 = vmax.f32 %v1576, 0.0
        %v1657 = vmax.f32 %v1577, 0.0
        %v1658 = vmax.f32 %v1578, 0.0
        %v1659 = vmax.f32 %v1579, 0.0
        %v1660 = vmax.f32 %v1580, 0.0
        %v1661 = vmax.f32 %v1581, 0.0
        %v1662 = vmax.f32 %v1582, 0.0
        %v1663 = vmax.f32 %v1583, 0.0
        %v1664 = vmax.f32 %v1584, 0.0
        %v1665 = vmax.f32 %v1585, 0.0
        %v1666 = vmax.f32 %v1586, 0.0
        %v1667 = vmax.f32 %v1587, 0.0
        %v1668 = vld [vmem:[%s460] sm:$0xff]
        %v1669 = vld [vmem:[%s460 + $0x8] sm:$0xff]
        %v1670 = vld [vmem:[%s460 + $0x10] sm:$0xff]
        %v1671 = vld [vmem:[%s460 + $0x18] sm:$0xff]
        %v1673 = vsel %vm870, %v1668, 0
        %v1676 = vsel %vm870, %v1669, 0
        %v1679 = vsel %vm870, %v1670, 0
        %v1682 = vsel %vm870, %v1671, 0
        %1684 = vmatprep.subr.mxu0 %v1589
        %1685 = vmatpush1.msra.mxu0 %v1588
        %1686 = vmatprep.subr.mxu0 %v1599
        %1687 = vmatpush1.msra.mxu0 %v1598
        %1688 = vmatprep.subr.mxu0 %v1609
        %1689 = vmatpush1.msra.mxu0 %v1608
        %1690 = vmatprep.subr.mxu0 %v1619
        %1691 = vmatpush1.msra.mxu0 %v1618
        %1692 = vmatprep.subr.mxu0 %v1629
        %1693 = vmatpush1.msra.mxu0 %v1628
        %1694 = vmatprep.subr.mxu0 %v1639
        %1695 = vmatpush1.msra.mxu0 %v1638
        %1696 = vmatprep.subr.mxu0 %v1649
        %1697 = vmatpush1.msra.mxu0 %v1648
        %1698 = vmatprep.subr.mxu0 %v1659
        %1699 = vmatpush1.msra.mxu0 %v1658
        %1700 = vmatprep.subr.mxu0 0.0
        %1701 = vmatpush1.msra.mxu0 0.0
        %1702 = vmatprep.subr.mxu0 0.0
        %1703 = vmatpush1.msra.mxu0 0.0
        %1704 = vmatprep.subr.mxu0 0.0
        %1705 = vmatpush1.msra.mxu0 0.0
        %1706 = vmatprep.subr.mxu0 0.0
        %1707 = vmatpush1.msra.mxu0 0.0
        %1708 = vmatprep.subr.mxu0 0.0
        %1709 = vmatpush1.msra.mxu0 0.0
        %1710 = vmatprep.subr.mxu0 0.0
        %1711 = vmatpush1.msra.mxu0 0.0
        %1712 = vmatprep.subr.mxu0 0.0
        %1713 = vmatpush1.msra.mxu0 0.0
        %1714 = vmatprep.subr.mxu0 0.0
        %1715 = vmatpush1.msra.mxu0 0.0
        %1716 = vmatprep.subr.mxu0 0.0
        %1717 = vmatpush1.msra.mxu0 0.0
        %1718 = vmatprep.subr.mxu0 0.0
        %1719 = vmatpush1.msra.mxu0 0.0
        %1720 = vmatprep.subr.mxu0 0.0
        %1721 = vmatpush1.msra.mxu0 0.0
        %1722 = vmatprep.subr.mxu0 0.0
        %1723 = vmatpush1.msra.mxu0 0.0
        %1724 = vmatprep.subr.mxu0 0.0
        %1725 = vmatpush1.msra.mxu0 0.0
        %1726 = vmatprep.subr.mxu0 0.0
        %1727 = vmatpush1.msra.mxu0 0.0
        %1728 = vmatprep.subr.mxu0 0.0
        %1729 = vmatpush1.msra.mxu0 0.0
        %1730 = vmatprep.subr.mxu0 0.0
        %1731 = vmatpush1.msra.mxu0 0.0
        %1732 = vmatprep.subr.mxu0 0.0
        %1733 = vmatpush1.msra.mxu0 0.0
        %1734 = vmatprep.subr.mxu0 0.0
        %1735 = vmatpush1.msra.mxu0 0.0
        %1736 = vmatprep.subr.mxu0 0.0
        %1737 = vmatpush1.msra.mxu0 0.0
        %1738 = vmatprep.subr.mxu0 0.0
        %1739 = vmatpush1.msra.mxu0 0.0
        %1740 = vmatprep.subr.mxu0 0.0
        %1741 = vmatpush1.msra.mxu0 0.0
        %1742 = vmatprep.subr.mxu0 0.0
        %1743 = vmatpush1.msra.mxu0 0.0
        %1744 = vmatprep.subr.mxu0 0.0
        %1745 = vmatpush1.msra.mxu0 0.0
        %1746 = vmatprep.subr.mxu0 0.0
        %1747 = vmatpush1.msra.mxu0 0.0
        %1748 = vmatprep.mubr.f32.mxu0 0.0
        %1749 = vmatmul.mubr.f32.gmra.mrb[0].mxu0 %v1673
        %v1750 = vpop.f32.mrb[0].mxu0
        %v1751 = vadd.f32 0.0, %v1750
        %v1752 = vpop.f32.mrb[0].mxu0
        %v1753 = vadd.f32 0.0, %v1752
        %1754 = vmatprep.mubr.f32.mxu0 0.0
        %1755 = vmatmul.mubr.f32.gmra.mrb[0].mxu0 %v1676
        %v1756 = vpop.f32.mrb[0].mxu0
        %v1757 = vadd.f32 0.0, %v1756
        %v1758 = vpop.f32.mrb[0].mxu0
        %v1759 = vadd.f32 0.0, %v1758
        %1760 = vmatprep.mubr.f32.mxu0 0.0
        %1761 = vmatmul.mubr.f32.gmra.mrb[0].mxu0 %v1679
        %v1762 = vpop.f32.mrb[0].mxu0
        %v1763 = vadd.f32 0.0, %v1762
        %v1764 = vpop.f32.mrb[0].mxu0
        %v1765 = vadd.f32 0.0, %v1764
        %1766 = vmatprep.mubr.f32.mxu0 0.0
        %1767 = vmatmul.mubr.f32.gmra.mrb[0].mxu0 %v1682
        %v1768 = vpop.f32.mrb[0].mxu0
        %v1769 = vadd.f32 0.0, %v1768
        %v1770 = vpop.f32.mrb[0].mxu0
        %v1771 = vadd.f32 0.0, %v1770
        %1772 = vdwg.mxu0
        %1773 = vmatprep.subr.mxu0 %v1591
        %1774 = vmatpush1.msra.mxu0 %v1590
        %1775 = vmatprep.subr.mxu0 %v1601
        %1776 = vmatpush1.msra.mxu0 %v1600
        %1777 = vmatprep.subr.mxu0 %v1611
        %1778 = vmatpush1.msra.mxu0 %v1610
        %1779 = vmatprep.subr.mxu0 %v1621
        %1780 = vmatpush1.msra.mxu0 %v1620
        %1781 = vmatprep.subr.mxu0 %v1631
        %1782 = vmatpush1.msra.mxu0 %v1630
        %1783 = vmatprep.subr.mxu0 %v1641
        %1784 = vmatpush1.msra.mxu0 %v1640
        %1785 = vmatprep.subr.mxu0 %v1651
        %1786 = vmatpush1.msra.mxu0 %v1650
        %1787 = vmatprep.subr.mxu0 %v1661
        %1788 = vmatpush1.msra.mxu0 %v1660
        %1789 = vmatprep.subr.mxu0 0.0
        %1790 = vmatpush1.msra.mxu0 0.0
        %1791 = vmatprep.subr.mxu0 0.0
        %1792 = vmatpush1.msra.mxu0 0.0
        %1793 = vmatprep.subr.mxu0 0.0
        %1794 = vmatpush1.msra.mxu0 0.0
        %1795 = vmatprep.subr.mxu0 0.0
        %1796 = vmatpush1.msra.mxu0 0.0
        %1797 = vmatprep.subr.mxu0 0.0
        %1798 = vmatpush1.msra.mxu0 0.0
        %1799 = vmatprep.subr.mxu0 0.0
        %1800 = vmatpush1.msra.mxu0 0.0
        %1801 = vmatprep.subr.mxu0 0.0
        %1802 = vmatpush1.msra.mxu0 0.0
        %1803 = vmatprep.subr.mxu0 0.0
        %1804 = vmatpush1.msra.mxu0 0.0
        %1805 = vmatprep.subr.mxu0 0.0
        %1806 = vmatpush1.msra.mxu0 0.0
        %1807 = vmatprep.subr.mxu0 0.0
        %1808 = vmatpush1.msra.mxu0 0.0
        %1809 = vmatprep.subr.mxu0 0.0
        %1810 = vmatpush1.msra.mxu0 0.0
        %1811 = vmatprep.subr.mxu0 0.0
        %1812 = vmatpush1.msra.mxu0 0.0
        %1813 = vmatprep.subr.mxu0 0.0
        %1814 = vmatpush1.msra.mxu0 0.0
        %1815 = vmatprep.subr.mxu0 0.0
        %1816 = vmatpush1.msra.mxu0 0.0
        %1817 = vmatprep.subr.mxu0 0.0
        %1818 = vmatpush1.msra.mxu0 0.0
        %1819 = vmatprep.subr.mxu0 0.0
        %1820 = vmatpush1.msra.mxu0 0.0
        %1821 = vmatprep.subr.mxu0 0.0
        %1822 = vmatpush1.msra.mxu0 0.0
        %1823 = vmatprep.subr.mxu0 0.0
        %1824 = vmatpush1.msra.mxu0 0.0
        %1825 = vmatprep.subr.mxu0 0.0
        %1826 = vmatpush1.msra.mxu0 0.0
        %1827 = vmatprep.subr.mxu0 0.0
        %1828 = vmatpush1.msra.mxu0 0.0
        %1829 = vmatprep.subr.mxu0 0.0
        %1830 = vmatpush1.msra.mxu0 0.0
        %1831 = vmatprep.subr.mxu0 0.0
        %1832 = vmatpush1.msra.mxu0 0.0
        %1833 = vmatprep.subr.mxu0 0.0
        %1834 = vmatpush1.msra.mxu0 0.0
        %1835 = vmatprep.subr.mxu0 0.0
        %1836 = vmatpush1.msra.mxu0 0.0
        %1837 = vmatprep.mubr.f32.mxu0 0.0
        %1838 = vmatmul.mubr.f32.gmra.mrb[0].mxu0 %v1673
        %v1839 = vpop.f32.mrb[0].mxu0
        %v1840 = vadd.f32 0.0, %v1839
        %v1841 = vpop.f32.mrb[0].mxu0
        %v1842 = vadd.f32 0.0, %v1841
        %1843 = vmatprep.mubr.f32.mxu0 0.0
        %1844 = vmatmul.mubr.f32.gmra.mrb[0].mxu0 %v1676
        %v1845 = vpop.f32.mrb[0].mxu0
        %v1846 = vadd.f32 0.0, %v1845
        %v1847 = vpop.f32.mrb[0].mxu0
        %v1848 = vadd.f32 0.0, %v1847
        %1849 = vmatprep.mubr.f32.mxu0 0.0
        %1850 = vmatmul.mubr.f32.gmra.mrb[0].mxu0 %v1679
        %v1851 = vpop.f32.mrb[0].mxu0
        %v1852 = vadd.f32 0.0, %v1851
        %v1853 = vpop.f32.mrb[0].mxu0
        %v1854 = vadd.f32 0.0, %v1853
        %1855 = vmatprep.mubr.f32.mxu0 0.0
        %1856 = vmatmul.mubr.f32.gmra.mrb[0].mxu0 %v1682
        %v1857 = vpop.f32.mrb[0].mxu0
        %v1858 = vadd.f32 0.0, %v1857
        %v1859 = vpop.f32.mrb[0].mxu0
        %v1860 = vadd.f32 0.0, %v1859
        %1861 = vdwg.mxu0
        %1862 = vmatprep.subr.mxu0 %v1593
        %1863 = vmatpush1.msra.mxu0 %v1592
        %1864 = vmatprep.subr.mxu0 %v1603
        %1865 = vmatpush1.msra.mxu0 %v1602
        %1866 = vmatprep.subr.mxu0 %v1613
        %1867 = vmatpush1.msra.mxu0 %v1612
        %1868 = vmatprep.subr.mxu0 %v1623
        %1869 = vmatpush1.msra.mxu0 %v1622
        %1870 = vmatprep.subr.mxu0 %v1633
        %1871 = vmatpush1.msra.mxu0 %v1632
        %1872 = vmatprep.subr.mxu0 %v1643
        %1873 = vmatpush1.msra.mxu0 %v1642
        %1874 = vmatprep.subr.mxu0 %v1653
        %1875 = vmatpush1.msra.mxu0 %v1652
        %1876 = vmatprep.subr.mxu0 %v1663
        %1877 = vmatpush1.msra.mxu0 %v1662
        %1878 = vmatprep.subr.mxu0 0.0
        %1879 = vmatpush1.msra.mxu0 0.0
        %1880 = vmatprep.subr.mxu0 0.0
        %1881 = vmatpush1.msra.mxu0 0.0
        %1882 = vmatprep.subr.mxu0 0.0
        %1883 = vmatpush1.msra.mxu0 0.0
        %1884 = vmatprep.subr.mxu0 0.0
        %1885 = vmatpush1.msra.mxu0 0.0
        %1886 = vmatprep.subr.mxu0 0.0
        %1887 = vmatpush1.msra.mxu0 0.0
        %1888 = vmatprep.subr.mxu0 0.0
        %1889 = vmatpush1.msra.mxu0 0.0
        %1890 = vmatprep.subr.mxu0 0.0
        %1891 = vmatpush1.msra.mxu0 0.0
        %1892 = vmatprep.subr.mxu0 0.0
        %1893 = vmatpush1.msra.mxu0 0.0
        %1894 = vmatprep.subr.mxu0 0.0
        %1895 = vmatpush1.msra.mxu0 0.0
        %1896 = vmatprep.subr.mxu0 0.0
        %1897 = vmatpush1.msra.mxu0 0.0
        %1898 = vmatprep.subr.mxu0 0.0
        %1899 = vmatpush1.msra.mxu0 0.0
        %1900 = vmatprep.subr.mxu0 0.0
        %1901 = vmatpush1.msra.mxu0 0.0
        %1902 = vmatprep.subr.mxu0 0.0
        %1903 = vmatpush1.msra.mxu0 0.0
        %1904 = vmatprep.subr.mxu0 0.0
        %1905 = vmatpush1.msra.mxu0 0.0
        %1906 = vmatprep.subr.mxu0 0.0
        %1907 = vmatpush1.msra.mxu0 0.0
        %1908 = vmatprep.subr.mxu0 0.0
        %1909 = vmatpush1.msra.mxu0 0.0
        %1910 = vmatprep.subr.mxu0 0.0
        %1911 = vmatpush1.msra.mxu0 0.0
        %1912 = vmatprep.subr.mxu0 0.0
        %1913 = vmatpush1.msra.mxu0 0.0
        %1914 = vmatprep.subr.mxu0 0.0
        %1915 = vmatpush1.msra.mxu0 0.0
        %1916 = vmatprep.subr.mxu0 0.0
        %1917 = vmatpush1.msra.mxu0 0.0
        %1918 = vmatprep.subr.mxu0 0.0
        %1919 = vmatpush1.msra.mxu0 0.0
        %1920 = vmatprep.subr.mxu0 0.0
        %1921 = vmatpush1.msra.mxu0 0.0
        %1922 = vmatprep.subr.mxu0 0.0
        %1923 = vmatpush1.msra.mxu0 0.0
        %1924 = vmatprep.subr.mxu0 0.0
        %1925 = vmatpush1.msra.mxu0 0.0
        %1926 = vmatprep.mubr.f32.mxu0 0.0
        %1927 = vmatmul.mubr.f32.gmra.mrb[0].mxu0 %v1673
        %v1928 = vpop.f32.mrb[0].mxu0
        %v1929 = vadd.f32 0.0, %v1928
        %v1930 = vpop.f32.mrb[0].mxu0
        %v1931 = vadd.f32 0.0, %v1930
        %1932 = vmatprep.mubr.f32.mxu0 0.0
        %1933 = vmatmul.mubr.f32.gmra.mrb[0].mxu0 %v1676
        %v1934 = vpop.f32.mrb[0].mxu0
        %v1935 = vadd.f32 0.0, %v1934
        %v1936 = vpop.f32.mrb[0].mxu0
        %v1937 = vadd.f32 0.0, %v1936
        %1938 = vmatprep.mubr.f32.mxu0 0.0
        %1939 = vmatmul.mubr.f32.gmra.mrb[0].mxu0 %v1679
        %v1940 = vpop.f32.mrb[0].mxu0
        %v1941 = vadd.f32 0.0, %v1940
        %v1942 = vpop.f32.mrb[0].mxu0
        %v1943 = vadd.f32 0.0, %v1942
        %1944 = vmatprep.mubr.f32.mxu0 0.0
        %1945 = vmatmul.mubr.f32.gmra.mrb[0].mxu0 %v1682
        %v1946 = vpop.f32.mrb[0].mxu0
        %v1947 = vadd.f32 0.0, %v1946
        %v1948 = vpop.f32.mrb[0].mxu0
        %v1949 = vadd.f32 0.0, %v1948
        %1950 = vdwg.mxu0
        %1951 = vmatprep.subr.mxu0 %v1595
        %1952 = vmatpush1.msra.mxu0 %v1594
        %1953 = vmatprep.subr.mxu0 %v1605
        %1954 = vmatpush1.msra.mxu0 %v1604
        %1955 = vmatprep.subr.mxu0 %v1615
        %1956 = vmatpush1.msra.mxu0 %v1614
        %1957 = vmatprep.subr.mxu0 %v1625
        %1958 = vmatpush1.msra.mxu0 %v1624
        %1959 = vmatprep.subr.mxu0 %v1635
        %1960 = vmatpush1.msra.mxu0 %v1634
        %1961 = vmatprep.subr.mxu0 %v1645
        %1962 = vmatpush1.msra.mxu0 %v1644
        %1963 = vmatprep.subr.mxu0 %v1655
        %1964 = vmatpush1.msra.mxu0 %v1654
        %1965 = vmatprep.subr.mxu0 %v1665
        %1966 = vmatpush1.msra.mxu0 %v1664
        %1967 = vmatprep.subr.mxu0 0.0
        %1968 = vmatpush1.msra.mxu0 0.0
        %1969 = vmatprep.subr.mxu0 0.0
        %1970 = vmatpush1.msra.mxu0 0.0
        %1971 = vmatprep.subr.mxu0 0.0
        %1972 = vmatpush1.msra.mxu0 0.0
        %1973 = vmatprep.subr.mxu0 0.0
        %1974 = vmatpush1.msra.mxu0 0.0
        %1975 = vmatprep.subr.mxu0 0.0
        %1976 = vmatpush1.msra.mxu0 0.0
        %1977 = vmatprep.subr.mxu0 0.0
        %1978 = vmatpush1.msra.mxu0 0.0
        %1979 = vmatprep.subr.mxu0 0.0
        %1980 = vmatpush1.msra.mxu0 0.0
        %1981 = vmatprep.subr.mxu0 0.0
        %1982 = vmatpush1.msra.mxu0 0.0
        %1983 = vmatprep.subr.mxu0 0.0
        %1984 = vmatpush1.msra.mxu0 0.0
        %1985 = vmatprep.subr.mxu0 0.0
        %1986 = vmatpush1.msra.mxu0 0.0
        %1987 = vmatprep.subr.mxu0 0.0
        %1988 = vmatpush1.msra.mxu0 0.0
        %1989 = vmatprep.subr.mxu0 0.0
        %1990 = vmatpush1.msra.mxu0 0.0
        %1991 = vmatprep.subr.mxu0 0.0
        %1992 = vmatpush1.msra.mxu0 0.0
        %1993 = vmatprep.subr.mxu0 0.0
        %1994 = vmatpush1.msra.mxu0 0.0
        %1995 = vmatprep.subr.mxu0 0.0
        %1996 = vmatpush1.msra.mxu0 0.0
        %1997 = vmatprep.subr.mxu0 0.0
        %1998 = vmatpush1.msra.mxu0 0.0
        %1999 = vmatprep.subr.mxu0 0.0
        %2000 = vmatpush1.msra.mxu0 0.0
        %2001 = vmatprep.subr.mxu0 0.0
        %2002 = vmatpush1.msra.mxu0 0.0
        %2003 = vmatprep.subr.mxu0 0.0
        %2004 = vmatpush1.msra.mxu0 0.0
        %2005 = vmatprep.subr.mxu0 0.0
        %2006 = vmatpush1.msra.mxu0 0.0
        %2007 = vmatprep.subr.mxu0 0.0
        %2008 = vmatpush1.msra.mxu0 0.0
        %2009 = vmatprep.subr.mxu0 0.0
        %2010 = vmatpush1.msra.mxu0 0.0
        %2011 = vmatprep.subr.mxu0 0.0
        %2012 = vmatpush1.msra.mxu0 0.0
        %2013 = vmatprep.subr.mxu0 0.0
        %2014 = vmatpush1.msra.mxu0 0.0
        %2015 = vmatprep.mubr.f32.mxu0 0.0
        %2016 = vmatmul.mubr.f32.gmra.mrb[0].mxu0 %v1673
        %v2017 = vpop.f32.mrb[0].mxu0
        %v2018 = vadd.f32 0.0, %v2017
        %v2019 = vpop.f32.mrb[0].mxu0
        %v2020 = vadd.f32 0.0, %v2019
        %2021 = vmatprep.mubr.f32.mxu0 0.0
        %2022 = vmatmul.mubr.f32.gmra.mrb[0].mxu0 %v1676
        %v2023 = vpop.f32.mrb[0].mxu0
        %v2024 = vadd.f32 0.0, %v2023
        %v2025 = vpop.f32.mrb[0].mxu0
        %v2026 = vadd.f32 0.0, %v2025
        %2027 = vmatprep.mubr.f32.mxu0 0.0
        %2028 = vmatmul.mubr.f32.gmra.mrb[0].mxu0 %v1679
        %v2029 = vpop.f32.mrb[0].mxu0
        %v2030 = vadd.f32 0.0, %v2029
        %v2031 = vpop.f32.mrb[0].mxu0
        %v2032 = vadd.f32 0.0, %v2031
        %2033 = vmatprep.mubr.f32.mxu0 0.0
        %2034 = vmatmul.mubr.f32.gmra.mrb[0].mxu0 %v1682
        %v2035 = vpop.f32.mrb[0].mxu0
        %v2036 = vadd.f32 0.0, %v2035
        %v2037 = vpop.f32.mrb[0].mxu0
        %v2038 = vadd.f32 0.0, %v2037
        %2039 = vdwg.mxu0
        %2040 = vmatprep.subr.mxu0 %v1597
        %2041 = vmatpush1.msra.mxu0 %v1596
        %2042 = vmatprep.subr.mxu0 %v1607
        %2043 = vmatpush1.msra.mxu0 %v1606
        %2044 = vmatprep.subr.mxu0 %v1617
        %2045 = vmatpush1.msra.mxu0 %v1616
        %2046 = vmatprep.subr.mxu0 %v1627
        %2047 = vmatpush1.msra.mxu0 %v1626
        %2048 = vmatprep.subr.mxu0 %v1637
        %2049 = vmatpush1.msra.mxu0 %v1636
        %2050 = vmatprep.subr.mxu0 %v1647
        %2051 = vmatpush1.msra.mxu0 %v1646
        %2052 = vmatprep.subr.mxu0 %v1657
        %2053 = vmatpush1.msra.mxu0 %v1656
        %2054 = vmatprep.subr.mxu0 %v1667
        %2055 = vmatpush1.msra.mxu0 %v1666
        %2056 = vmatprep.subr.mxu0 0.0
        %2057 = vmatpush1.msra.mxu0 0.0
        %2058 = vmatprep.subr.mxu0 0.0
        %2059 = vmatpush1.msra.mxu0 0.0
        %2060 = vmatprep.subr.mxu0 0.0
        %2061 = vmatpush1.msra.mxu0 0.0
        %2062 = vmatprep.subr.mxu0 0.0
        %2063 = vmatpush1.msra.mxu0 0.0
        %2064 = vmatprep.subr.mxu0 0.0
        %2065 = vmatpush1.msra.mxu0 0.0
        %2066 = vmatprep.subr.mxu0 0.0
        %2067 = vmatpush1.msra.mxu0 0.0
        %2068 = vmatprep.subr.mxu0 0.0
        %2069 = vmatpush1.msra.mxu0 0.0
        %2070 = vmatprep.subr.mxu0 0.0
        %2071 = vmatpush1.msra.mxu0 0.0
        %2072 = vmatprep.subr.mxu0 0.0
        %2073 = vmatpush1.msra.mxu0 0.0
        %2074 = vmatprep.subr.mxu0 0.0
        %2075 = vmatpush1.msra.mxu0 0.0
        %2076 = vmatprep.subr.mxu0 0.0
        %2077 = vmatpush1.msra.mxu0 0.0
        %2078 = vmatprep.subr.mxu0 0.0
        %2079 = vmatpush1.msra.mxu0 0.0
        %2080 = vmatprep.subr.mxu0 0.0
        %2081 = vmatpush1.msra.mxu0 0.0
        %2082 = vmatprep.subr.mxu0 0.0
        %2083 = vmatpush1.msra.mxu0 0.0
        %2084 = vmatprep.subr.mxu0 0.0
        %2085 = vmatpush1.msra.mxu0 0.0
        %2086 = vmatprep.subr.mxu0 0.0
        %2087 = vmatpush1.msra.mxu0 0.0
        %2088 = vmatprep.subr.mxu0 0.0
        %2089 = vmatpush1.msra.mxu0 0.0
        %2090 = vmatprep.subr.mxu0 0.0
        %2091 = vmatpush1.msra.mxu0 0.0
        %2092 = vmatprep.subr.mxu0 0.0
        %2093 = vmatpush1.msra.mxu0 0.0
        %2094 = vmatprep.subr.mxu0 0.0
        %2095 = vmatpush1.msra.mxu0 0.0
        %2096 = vmatprep.subr.mxu0 0.0
        %2097 = vmatpush1.msra.mxu0 0.0
        %2098 = vmatprep.subr.mxu0 0.0
        %2099 = vmatpush1.msra.mxu0 0.0
        %2100 = vmatprep.subr.mxu0 0.0
        %2101 = vmatpush1.msra.mxu0 0.0
        %2102 = vmatprep.subr.mxu0 0.0
        %2103 = vmatpush1.msra.mxu0 0.0
        %2104 = vmatprep.mubr.f32.mxu0 0.0
        %2105 = vmatmul.mubr.f32.gmra.mrb[0].mxu0 %v1673
        %v2106 = vpop.f32.mrb[0].mxu0
        %v2107 = vadd.f32 0.0, %v2106
        %v2108 = vpop.f32.mrb[0].mxu0
        %v2109 = vadd.f32 0.0, %v2108
        %2110 = vmatprep.mubr.f32.mxu0 0.0
        %2111 = vmatmul.mubr.f32.gmra.mrb[0].mxu0 %v1676
        %v2112 = vpop.f32.mrb[0].mxu0
        %v2113 = vadd.f32 0.0, %v2112
        %v2114 = vpop.f32.mrb[0].mxu0
        %v2115 = vadd.f32 0.0, %v2114
        %2116 = vmatprep.mubr.f32.mxu0 0.0
        %2117 = vmatmul.mubr.f32.gmra.mrb[0].mxu0 %v1679
        %v2118 = vpop.f32.mrb[0].mxu0
        %v2119 = vadd.f32 0.0, %v2118
        %v2120 = vpop.f32.mrb[0].mxu0
        %v2121 = vadd.f32 0.0, %v2120
        %2122 = vmatprep.mubr.f32.mxu0 0.0
        %2123 = vmatmul.mubr.f32.gmra.mrb[0].mxu0 %v1682
        %v2124 = vpop.f32.mrb[0].mxu0
        %v2125 = vadd.f32 0.0, %v2124
        %v2126 = vpop.f32.mrb[0].mxu0
        %v2127 = vadd.f32 0.0, %v2126
        %2128 = vdwg.mxu0
        %v2129 = vld [vmem:[%s465] sm:$0xff]
        %v2130 = vld [vmem:[%s465 + $0x8] sm:$0xff]
        %v2131 = vld [vmem:[%s465 + $0x10] sm:$0xff]
        %v2132 = vld [vmem:[%s465 + $0x18] sm:$0xff]
        %2134 = vset.pattern.permute.xlu0 0
        %2135 = vperm.xlu0 %2134, %v2129
        %v2136 = vpop.permute.xlu0 %2135
        %2139 = vset.pattern.permute.xlu0 0
        %2140 = vperm.xlu0 %2139, %v2130
        %v2141 = vpop.permute.xlu0 %2140
        %2144 = vset.pattern.permute.xlu0 0
        %2145 = vperm.xlu0 %2144, %v2131
        %v2146 = vpop.permute.xlu0 %2145
        %2149 = vset.pattern.permute.xlu0 0
        %2150 = vperm.xlu0 %2149, %v2132
        %v2151 = vpop.permute.xlu0 %2150
        %v2153 = vsub.f32 %v1751, %v2136
        %v2154 = vsub.f32 %v1753, %v2136
        %v2155 = vsub.f32 %v1840, %v2136
        %v2156 = vsub.f32 %v1842, %v2136
        %v2157 = vsub.f32 %v1929, %v2136
        %v2158 = vsub.f32 %v1931, %v2136
        %v2159 = vsub.f32 %v2018, %v2136
        %v2160 = vsub.f32 %v2020, %v2136
        %v2161 = vsub.f32 %v2107, %v2136
        %v2162 = vsub.f32 %v2109, %v2136
        %v2163 = vsub.f32 %v1757, %v2141
        %v2164 = vsub.f32 %v1759, %v2141
        %v2165 = vsub.f32 %v1846, %v2141
        %v2166 = vsub.f32 %v1848, %v2141
        %v2167 = vsub.f32 %v1935, %v2141
        %v2168 = vsub.f32 %v1937, %v2141
        %v2169 = vsub.f32 %v2024, %v2141
        %v2170 = vsub.f32 %v2026, %v2141
        %v2171 = vsub.f32 %v2113, %v2141
        %v2172 = vsub.f32 %v2115, %v2141
        %v2173 = vsub.f32 %v1763, %v2146
        %v2174 = vsub.f32 %v1765, %v2146
        %v2175 = vsub.f32 %v1852, %v2146
        %v2176 = vsub.f32 %v1854, %v2146
        %v2177 = vsub.f32 %v1941, %v2146
        %v2178 = vsub.f32 %v1943, %v2146
        %v2179 = vsub.f32 %v2030, %v2146
        %v2180 = vsub.f32 %v2032, %v2146
        %v2181 = vsub.f32 %v2119, %v2146
        %v2182 = vsub.f32 %v2121, %v2146
        %v2183 = vsub.f32 %v1769, %v2151
        %v2184 = vsub.f32 %v1771, %v2151
        %v2185 = vsub.f32 %v1858, %v2151
        %v2186 = vsub.f32 %v1860, %v2151
        %v2187 = vsub.f32 %v1947, %v2151
        %v2188 = vsub.f32 %v1949, %v2151
        %v2189 = vsub.f32 %v2036, %v2151
        %v2190 = vsub.f32 %v2038, %v2151
        %v2191 = vsub.f32 %v2125, %v2151
        %v2192 = vsub.f32 %v2127, %v2151
        %v2193 = vmax.f32 %v2153, 0.0
        %v2194 = vmax.f32 %v2154, 0.0
        %v2195 = vmax.f32 %v2155, 0.0
        %v2196 = vmax.f32 %v2156, 0.0
        %v2197 = vmax.f32 %v2157, 0.0
        %v2198 = vmax.f32 %v2158, 0.0
        %v2199 = vmax.f32 %v2159, 0.0
        %v2200 = vmax.f32 %v2160, 0.0
        %v2201 = vmax.f32 %v2161, 0.0
        %v2202 = vmax.f32 %v2162, 0.0
        %v2203 = vmax.f32 %v2163, 0.0
        %v2204 = vmax.f32 %v2164, 0.0
        %v2205 = vmax.f32 %v2165, 0.0
        %v2206 = vmax.f32 %v2166, 0.0
        %v2207 = vmax.f32 %v2167, 0.0
        %v2208 = vmax.f32 %v2168, 0.0
        %v2209 = vmax.f32 %v2169, 0.0
        %v2210 = vmax.f32 %v2170, 0.0
        %v2211 = vmax.f32 %v2171, 0.0
        %v2212 = vmax.f32 %v2172, 0.0
        %v2213 = vmax.f32 %v2173, 0.0
        %v2214 = vmax.f32 %v2174, 0.0
        %v2215 = vmax.f32 %v2175, 0.0
        %v2216 = vmax.f32 %v2176, 0.0
        %v2217 = vmax.f32 %v2177, 0.0
        %v2218 = vmax.f32 %v2178, 0.0
        %v2219 = vmax.f32 %v2179, 0.0
        %v2220 = vmax.f32 %v2180, 0.0
        %v2221 = vmax.f32 %v2181, 0.0
        %v2222 = vmax.f32 %v2182, 0.0
        %v2223 = vmax.f32 %v2183, 0.0
        %v2224 = vmax.f32 %v2184, 0.0
        %v2225 = vmax.f32 %v2185, 0.0
        %v2226 = vmax.f32 %v2186, 0.0
        %v2227 = vmax.f32 %v2187, 0.0
        %v2228 = vmax.f32 %v2188, 0.0
        %v2229 = vmax.f32 %v2189, 0.0
        %v2230 = vmax.f32 %v2190, 0.0
        %v2231 = vmax.f32 %v2191, 0.0
        %v2232 = vmax.f32 %v2192, 0.0
        %v2233 = vld [vmem:[%s470] sm:$0xff]
        %v2234 = vld [vmem:[%s470 + $0x8] sm:$0xff]
        %v2235 = vld [vmem:[%s470 + $0x10] sm:$0xff]
        %v2236 = vld [vmem:[%s470 + $0x18] sm:$0xff]
        %2238 = vset.pattern.permute.xlu0 0
        %2239 = vperm.xlu0 %2238, %v2233
        %v2240 = vpop.permute.xlu0 %2239
        %2243 = vset.pattern.permute.xlu0 0
        %2244 = vperm.xlu0 %2243, %v2234
        %v2245 = vpop.permute.xlu0 %2244
        %2248 = vset.pattern.permute.xlu0 0
        %2249 = vperm.xlu0 %2248, %v2235
        %v2250 = vpop.permute.xlu0 %2249
        %2253 = vset.pattern.permute.xlu0 0
        %2254 = vperm.xlu0 %2253, %v2236
        %v2255 = vpop.permute.xlu0 %2254
        %v2257 = vmul.f32 %v2193, %v2240
        %v2258 = vmul.f32 %v2194, %v2240
        %v2259 = vmul.f32 %v2195, %v2240
        %v2260 = vmul.f32 %v2196, %v2240
        %v2261 = vmul.f32 %v2197, %v2240
        %v2262 = vmul.f32 %v2198, %v2240
        %v2263 = vmul.f32 %v2199, %v2240
        %v2264 = vmul.f32 %v2200, %v2240
        %v2265 = vmul.f32 %v2201, %v2240
        %v2266 = vmul.f32 %v2202, %v2240
        %v2267 = vmul.f32 %v2203, %v2245
        %v2268 = vmul.f32 %v2204, %v2245
        %v2269 = vmul.f32 %v2205, %v2245
        %v2270 = vmul.f32 %v2206, %v2245
        %v2271 = vmul.f32 %v2207, %v2245
        %v2272 = vmul.f32 %v2208, %v2245
        %v2273 = vmul.f32 %v2209, %v2245
        %v2274 = vmul.f32 %v2210, %v2245
        %v2275 = vmul.f32 %v2211, %v2245
        %v2276 = vmul.f32 %v2212, %v2245
        %v2277 = vmul.f32 %v2213, %v2250
        %v2278 = vmul.f32 %v2214, %v2250
        %v2279 = vmul.f32 %v2215, %v2250
        %v2280 = vmul.f32 %v2216, %v2250
        %v2281 = vmul.f32 %v2217, %v2250
        %v2282 = vmul.f32 %v2218, %v2250
        %v2283 = vmul.f32 %v2219, %v2250
        %v2284 = vmul.f32 %v2220, %v2250
        %v2285 = vmul.f32 %v2221, %v2250
        %v2286 = vmul.f32 %v2222, %v2250
        %v2287 = vmul.f32 %v2223, %v2255
        %v2288 = vmul.f32 %v2224, %v2255
        %v2289 = vmul.f32 %v2225, %v2255
        %v2290 = vmul.f32 %v2226, %v2255
        %v2291 = vmul.f32 %v2227, %v2255
        %v2292 = vmul.f32 %v2228, %v2255
        %v2293 = vmul.f32 %v2229, %v2255
        %v2294 = vmul.f32 %v2230, %v2255
        %v2295 = vmul.f32 %v2231, %v2255
        %v2296 = vmul.f32 %v2232, %v2255
        %v2297 = vadd.f32 %v2257, %v2267
        %v2298 = vadd.f32 %v2297, %v2277
        %v2299 = vadd.f32 %v2298, %v2287
        %v2300 = vrot.slane %v2299, 4
        %v2301 = vadd.f32 %v2299, %v2300
        %v2302 = vrot.slane %v2301, 2
        %v2303 = vadd.f32 %v2301, %v2302
        %v2304 = vrot.slane %v2303, 1
        %v2305 = vadd.f32 %v2303, %v2304
        %v2306 = vadd.f32 %v2258, %v2268
        %v2307 = vadd.f32 %v2306, %v2278
        %v2308 = vadd.f32 %v2307, %v2288
        %v2309 = vrot.slane %v2308, 4
        %v2310 = vadd.f32 %v2308, %v2309
        %v2311 = vrot.slane %v2310, 2
        %v2312 = vadd.f32 %v2310, %v2311
        %v2313 = vrot.slane %v2312, 1
        %v2314 = vadd.f32 %v2312, %v2313
        %v2315 = vadd.f32 %v2259, %v2269
        %v2316 = vadd.f32 %v2315, %v2279
        %v2317 = vadd.f32 %v2316, %v2289
        %v2318 = vrot.slane %v2317, 4
        %v2319 = vadd.f32 %v2317, %v2318
        %v2320 = vrot.slane %v2319, 2
        %v2321 = vadd.f32 %v2319, %v2320
        %v2322 = vrot.slane %v2321, 1
        %v2323 = vadd.f32 %v2321, %v2322
        %v2324 = vadd.f32 %v2260, %v2270
        %v2325 = vadd.f32 %v2324, %v2280
        %v2326 = vadd.f32 %v2325, %v2290
        %v2327 = vrot.slane %v2326, 4
        %v2328 = vadd.f32 %v2326, %v2327
        %v2329 = vrot.slane %v2328, 2
        %v2330 = vadd.f32 %v2328, %v2329
        %v2331 = vrot.slane %v2330, 1
        %v2332 = vadd.f32 %v2330, %v2331
        %v2333 = vadd.f32 %v2261, %v2271
        %v2334 = vadd.f32 %v2333, %v2281
        %v2335 = vadd.f32 %v2334, %v2291
        %v2336 = vrot.slane %v2335, 4
        %v2337 = vadd.f32 %v2335, %v2336
        %v2338 = vrot.slane %v2337, 2
        %v2339 = vadd.f32 %v2337, %v2338
        %v2340 = vrot.slane %v2339, 1
        %v2341 = vadd.f32 %v2339, %v2340
        %v2342 = vadd.f32 %v2262, %v2272
        %v2343 = vadd.f32 %v2342, %v2282
        %v2344 = vadd.f32 %v2343, %v2292
        %v2345 = vrot.slane %v2344, 4
        %v2346 = vadd.f32 %v2344, %v2345
        %v2347 = vrot.slane %v2346, 2
        %v2348 = vadd.f32 %v2346, %v2347
        %v2349 = vrot.slane %v2348, 1
        %v2350 = vadd.f32 %v2348, %v2349
        %v2351 = vadd.f32 %v2263, %v2273
        %v2352 = vadd.f32 %v2351, %v2283
        %v2353 = vadd.f32 %v2352, %v2293
        %v2354 = vrot.slane %v2353, 4
        %v2355 = vadd.f32 %v2353, %v2354
        %v2356 = vrot.slane %v2355, 2
        %v2357 = vadd.f32 %v2355, %v2356
        %v2358 = vrot.slane %v2357, 1
        %v2359 = vadd.f32 %v2357, %v2358
        %v2360 = vadd.f32 %v2264, %v2274
        %v2361 = vadd.f32 %v2360, %v2284
        %v2362 = vadd.f32 %v2361, %v2294
        %v2363 = vrot.slane %v2362, 4
        %v2364 = vadd.f32 %v2362, %v2363
        %v2365 = vrot.slane %v2364, 2
        %v2366 = vadd.f32 %v2364, %v2365
        %v2367 = vrot.slane %v2366, 1
        %v2368 = vadd.f32 %v2366, %v2367
        %v2369 = vadd.f32 %v2265, %v2275
        %v2370 = vadd.f32 %v2369, %v2285
        %v2371 = vadd.f32 %v2370, %v2295
        %v2372 = vrot.slane %v2371, 4
        %v2373 = vadd.f32 %v2371, %v2372
        %v2374 = vrot.slane %v2373, 2
        %v2375 = vadd.f32 %v2373, %v2374
        %v2376 = vrot.slane %v2375, 1
        %v2377 = vadd.f32 %v2375, %v2376
        %vm2378 = vcmask 392192
        %v2379 = vsel %vm2378, %v2266, 0.0
        %v2380 = vsel %vm2378, %v2276, 0.0
        %v2381 = vadd.f32 %v2379, %v2380
        %v2382 = vsel %vm2378, %v2286, 0.0
        %v2383 = vadd.f32 %v2381, %v2382
        %v2384 = vsel %vm2378, %v2296, 0.0
        %v2385 = vadd.f32 %v2383, %v2384
        %v2386 = vrot.slane %v2385, 4
        %v2387 = vadd.f32 %v2385, %v2386
        %v2388 = vrot.slane %v2387, 2
        %v2389 = vadd.f32 %v2387, %v2388
        %v2390 = vrot.slane %v2389, 1
        %v2391 = vadd.f32 %v2389, %v2390
        %v2402 = vcombine.low %v2305, %v2314
        %v2403 = vcombine.low %v2323, %v2332
        %v2404 = vcombine.low %v2341, %v2350
        %v2405 = vcombine.low %v2359, %v2368
        %v2407 = vunpack.c.l.s4 1966171168
        %v2408 = vunpack.c.0.s8 %v2407
        %v2409 = vlaneseq
        %v2410 = vshrl.u32 %v2409, 7
        %v2411 = vsub.s32 %v2408, %v2410
        %v2412 = vrot.slane %v2402, %v2411
        %v2414 = vunpack.c.l.s4 1966171168
        %v2415 = vunpack.c.0.s8 %v2414
        %v2416 = vlaneseq
        %v2417 = vshrl.u32 %v2416, 7
        %v2418 = vsub.s32 %v2415, %v2417
        %v2419 = vrot.slane %v2403, %v2418
        %v2421 = vunpack.c.l.s4 1966171168
        %v2422 = vunpack.c.0.s8 %v2421
        %v2423 = vlaneseq
        %v2424 = vshrl.u32 %v2423, 7
        %v2425 = vsub.s32 %v2422, %v2424
        %v2426 = vrot.slane %v2404, %v2425
        %v2428 = vunpack.c.l.s4 1966171168
        %v2429 = vunpack.c.0.s8 %v2428
        %v2430 = vlaneseq
        %v2431 = vshrl.u32 %v2430, 7
        %v2432 = vsub.s32 %v2429, %v2431
        %v2433 = vrot.slane %v2405, %v2432
        %v2434 = vcombine.low %v2412, %v2419
        %v2435 = vcombine.low %v2426, %v2433
        %v2437 = vunpack.c.l.s4 1966171168
        %v2438 = vunpack.c.0.s8 %v2437
        %v2439 = vlaneseq
        %v2440 = vshrl.u32 %v2439, 7
        %v2441 = vsub.s32 %v2438, %v2440
        %v2442 = vrot.slane %v2434, %v2441
        %v2444 = vunpack.c.l.s4 1966171168
        %v2445 = vunpack.c.0.s8 %v2444
        %v2446 = vlaneseq
        %v2447 = vshrl.u32 %v2446, 7
        %v2448 = vsub.s32 %v2445, %v2447
        %v2449 = vrot.slane %v2435, %v2448
        %v2450 = vcombine.low %v2442, %v2449
        %v2451 = vcombine.low %v2377, %v2391
        %v2453 = vunpack.c.l.s4 1966171168
        %v2454 = vunpack.c.0.s8 %v2453
        %v2455 = vlaneseq
        %v2456 = vshrl.u32 %v2455, 7
        %v2457 = vsub.s32 %v2454, %v2456
        %v2458 = vrot.slane %v2451, %v2457
        %v2460 = vunpack.c.l.s4 1966171168
        %v2461 = vunpack.c.0.s8 %v2460
        %v2462 = vlaneseq
        %v2463 = vshrl.u32 %v2462, 7
        %v2464 = vsub.s32 %v2461, %v2463
        %v2465 = vrot.slane %v2458, %v2464
        %2468 = vst [vmem:[%s426] sm:$0xff] %v2450
        %v2469 = vlaneseq
        %vm2470 = vcmp.ge.s32.totalorder %v2469, 0
        %vm2471 = vcmp.lt.s32.totalorder %v2469, 176
        %vm2472 = vmand %vm2470, %vm2471
        %2473 = vst.msk [vmem:[%s426 + $0x8] sm:$0x3] %vm2472, %v2465
        %s2474 = sand.u32 %s254, 1
        %s2475 = scalar_lea.sflag [#allocation3], %s2474
        %s2476 = sand.u32 %s254, 1
        %s2477 = smul.addr %s2476, 10
        %s2478 = scalar_lea.vmem [#allocation2], %s2477
        // Predicated region
        $region53: #{tpu_custom_call.1} parent=51 // pred_check
          %p2479 = pneg %p264
        $region54: #{tpu_custom_call.1} parent=51 // pred_check_branch
          %2481 = sbr.rel (%p2479) target = $region56
        $region55: #{tpu_custom_call.1} parent=51 // pred_region
          %s2482 = smul.u32 10, %s27
          %s2484 = ssub.s32 160, 160
          %2485 = vsyncadd %s2475, %s2484
          %s2486 = smul.addr %s26, 10
          %s2487 = sadd.s32 %s2482, %s2486
          %s2488 = smul.addr %s2487, 16
          %s2489 = scalar_lea.hbm %s8, %s2488
          %s2491 = sshll.u32 %s2478, 4
          %s2492 = int_to_ptr.vmem [resolvable:$true] %s2491
          %2494 = dma.vmem_to_hbm [thread:$0]  %s2492, 160, %s2489, %s2475
        $region56: #{tpu_custom_call.1} parent=51 // pred_fallthru
          _
      $region52: #{tpu_custom_call.1} parent=5 // pred_fallthru
        _
      %p2495 = scmp.le.s32.totalorder 2, %s17
      // Predicated region
      $region57: #{tpu_custom_call.1} parent=5 // pred_check
        %p2496 = pneg %p2495
      $region58: #{tpu_custom_call.1} parent=5 // pred_check_branch
        %2498 = sbr.rel (%p2496) target = $region60
      $region59: #{tpu_custom_call.1} parent=5 // pred_region
        %s2499 = ssub.s32 %s17, 2
        // Predicated region
        $region61: #{tpu_custom_call.1} parent=59 // pred_check
          %p2500 = pneg %p270
        $region62: #{tpu_custom_call.1} parent=59 // pred_check_branch
          %2502 = sbr.rel (%p2500) target = $region64
        $region63: #{tpu_custom_call.1} parent=59 // pred_region
          %s2503 = sand.u32 %s255, 1
          %s2504 = scalar_lea.sflag [#allocation3], %s2503
          %s2505 = sand.u32 %s255, 1
          %s2506 = smul.addr %s2505, 10
          %s2507 = scalar_lea.vmem [#allocation2], %s2506
          %2508 = dma.done %s2504, 160
        $region64: #{tpu_custom_call.1} parent=59 // pred_fallthru
          _
      $region60: #{tpu_custom_call.1} parent=5 // pred_fallthru
        _
    $region6: #{tpu_custom_call.1} parent=1 // loop_footer
      %s21 = sadd.s32 1, %s17
    $region7: #{tpu_custom_call.1} parent=1 // loop_footer_branch
      %16 = sbr.rel target = $region3
    $region8: #{tpu_custom_call.1} parent=1 // loop_exit
      _
    %2509 = vsyncpa [#allocation3], 1
    %s2510 = scalar_lea.sflag [#allocation3], 1
    %2511 = vsyncpa %s2510, 1

</llo_original>
